<compile_context>
chip_gen: v6e
topology: v6e:2x2x1
jax: 0.10.0
libtpu: 0.0.40
codegen_flags: <defaults>
</compile_context>

<pallas_src>
import itertools
import numpy as np
import jax
import jax.numpy as jnp
from jax import lax
from jax.experimental import pallas as pl
from jax.experimental.pallas import tpu as pltpu

FEAT_DIMS = 32                    # module default is 256; small for the demo
X_DIM = 512                       # per-point feature dim implied by Linear(514, .)
IN_DIM = X_DIM + 2                # 514, fixed by the module
GRID_SIDE = int(np.sqrt(2048))    # 45
N_GRID = GRID_SIDE * GRID_SIDE    # 2025
TILE_PTS = 1024                   # grid points per step (lane axis, multiple of 128)


def onefold_mlp_kernel(gaug_ref, wb_ref, w2t_ref, b2_ref, w3t_ref, b3_ref,
                       w4t_ref, b4_ref, o_ref):
    """Activations are kept transposed: (features, points), points on lanes."""
    g = gaug_ref[...]                                   # (3, TILE): rows gx, gy, 1
    wb = wb_ref[...]                                    # (F, 3): [W1g^T | x@W1x + b1]

    # Linear(514,F) with the x-part hoisted into wb's 3rd column
    # -> Dropout (eval: identity) -> ReLU
    h = jnp.maximum(jnp.dot(wb, g, preferred_element_type=jnp.float32), 0.0)  # (F, TILE)

    # Residual_Linear_Layer -> ReLU   (y = x + Linear(x), transposed form)
    h = jnp.maximum(
        h + jnp.dot(w2t_ref[...], h, preferred_element_type=jnp.float32) + b2_ref[...],
        0.0)
    # Residual_Linear_Layer -> ReLU
    h = jnp.maximum(
        h + jnp.dot(w3t_ref[...], h, preferred_element_type=jnp.float32) + b3_ref[...],
        0.0)

    # Linear(F,2) -> Tanh.  Output stays transposed (2, TILE): lane-dense store.
    o = jnp.tanh(jnp.dot(w4t_ref[...], h, preferred_element_type=jnp.float32)
                 + b4_ref[...])
    o_ref[...] = o.astype(o_ref.dtype)


def make_params(key, feat_dims=FEAT_DIMS):
    """Deterministic PyTorch-Linear-style init: U(-1/sqrt(fan_in), 1/sqrt(fan_in))."""
    def linear(k, fan_in, fan_out):
        kw, kb = jax.random.split(k)
        bound = 1.0 / np.sqrt(fan_in)
        w = jax.random.uniform(kw, (fan_in, fan_out), jnp.float32, -bound, bound)
        b = jax.random.uniform(kb, (1, fan_out), jnp.float32, -bound, bound)
        return w, b

    k1, k2, k3, k4 = jax.random.split(key, 4)
    w1, b1 = linear(k1, IN_DIM, feat_dims)
    w2, b2 = linear(k2, feat_dims, feat_dims)
    w3, b3 = linear(k3, feat_dims, feat_dims)
    w4, b4 = linear(k4, feat_dims, 2)
    return (w1, b1, w2, b2, w3, b3, w4, b4)


def make_grid():
    lin = np.linspace(-1.0, 1.0, GRID_SIDE)
    g = np.array(list(itertools.product(lin, lin)), dtype=np.float32)  # (2025, 2)
    return jnp.asarray(g)


def onefold_forward(x, params, grid_pts, add_n_points: int = 0, rng_key=None):
    """x: (B, 1, 512) float32 -> (B, G, 2) float32."""
    if add_n_points > 0:
        # TODO(synk): torch.rand RNG stream cannot be matched exactly; uses jax.random.
        extra = jax.random.uniform(rng_key, (add_n_points, 2), jnp.float32) * 2.0 - 1.0
        grid_pts = jnp.concatenate([grid_pts, extra], axis=0)

    w1, b1, w2, b2, w3, b3, w4, b4 = params
    F = w1.shape[1]
    B = x.shape[0]
    G = grid_pts.shape[0]
    n_tiles = pl.cdiv(G, TILE_PTS)
    g_pad = n_tiles * TILE_PTS

    # --- Hoist the big K=512 matmul out of the per-grid-point path ------------
    # h1[b, t] = x[b] @ W1[:512] + grid[t] @ W1[512:] + b1
    hx = jnp.dot(x.reshape(B, X_DIM), w1[:X_DIM],
                 precision=lax.Precision.HIGHEST) + b1          # (B, F)
    w1g_t = w1[X_DIM:].T                                        # (F, 2)
    # Per-batch first-layer weight [W1g^T | hx[b]] applied to [gx; gy; 1].
    wb = jnp.concatenate(
        [jnp.broadcast_to(w1g_t[None], (B, F, 2)), hx[:, :, None]], axis=2)  # (B, F, 3)

    # --- Grid points: transposed, augmented with a row of ones, lane-padded ---
    gaug = jnp.concatenate(
        [grid_pts.T.astype(jnp.float32), jnp.ones((1, G), jnp.float32)], axis=0)  # (3, G)
    gaug = jnp.pad(gaug, ((0, 0), (0, g_pad - G)))                               # (3, g_pad)

    # Transposed weights / column biases for the (features, points) layout.
    w2t, b2c = w2.T, b2.reshape(F, 1)
    w3t, b3c = w3.T, b3.reshape(F, 1)
    w4t, b4c = w4.T, b4.reshape(2, 1)

    full = lambda a: pl.BlockSpec(a.shape, lambda bi, ti: (0, 0))

    out_t = pl.pallas_call(
        onefold_mlp_kernel,
        out_shape=jax.ShapeDtypeStruct((B, 2, g_pad), jnp.float32),
        grid_spec=pltpu.PrefetchScalarGridSpec(
            num_scalar_prefetch=0,
            grid=(B, n_tiles),                       # B * n_tiles = 4 steps (even)
            in_specs=[
                pl.BlockSpec((3, TILE_PTS), lambda bi, ti: (0, ti)),       # grid tile
                pl.BlockSpec((None, F, 3), lambda bi, ti: (bi, 0, 0)),     # per-batch W1
                full(w2t), full(b2c),
                full(w3t), full(b3c),
                full(w4t), full(b4c),
            ],
            out_specs=pl.BlockSpec((None, 2, TILE_PTS), lambda bi, ti: (bi, 0, ti)),
        ),
        compiler_params=pltpu.CompilerParams(
            dimension_semantics=("parallel", "parallel")),
    )(gaug, wb, w2t, b2c, w3t, b3c, w4t, b4c)

    # (B, 2, g_pad) -> (B, G, 2); tiny (≈32 KB) transpose done by XLA.
    return jnp.transpose(out_t, (0, 2, 1))[:, :G, :]


def onefold_reference(x, params, grid_pts):
    """Pure-JAX reference of the same forward pass (for validation)."""
    w1, b1, w2, b2, w3, b3, w4, b4 = params
    B = x.shape[0]
    G = grid_pts.shape[0]
    hp = lax.Precision.HIGHEST
    xr = jnp.broadcast_to(x, (B, G, X_DIM))
    gr = jnp.broadcast_to(grid_pts[None], (B, G, 2))
    h = jnp.concatenate([xr, gr], axis=-1)
    h = jax.nn.relu(jnp.dot(h, w1, precision=hp) + b1)
    h = jax.nn.relu(h + jnp.dot(h, w2, precision=hp) + b2)
    h = jax.nn.relu(h + jnp.dot(h, w3, precision=hp) + b3)
    return jnp.tanh(jnp.dot(h, w4, precision=hp) + b4)


if __name__ == "__main__":
    key = jax.random.PRNGKey(0)
    kx, kp = jax.random.split(key)

    B = 2
    x = jax.random.normal(kx, (B, 1, X_DIM), jnp.float32)    # (batch, 1, 512)
    params = make_params(kp, FEAT_DIMS)
    grid_pts = make_grid()                                   # (2025, 2)

    out = onefold_forward(x, params, grid_pts)
    out = jax.block_until_ready(out)

    ref = onefold_reference(x, params, grid_pts)
    np.testing.assert_allclose(np.asarray(out), np.asarray(ref), atol=1e-4, rtol=1e-4)
    assert out.shape == (B, N_GRID, 2)

    print("KERNEL_OK")
</pallas_src>

<mosaic_0001>
module attributes {stable_mosaic.version = 11 : i64} {
  func.func @onefold_mlp_kernel(%arg0: i32, %arg1: i32, %arg2: memref<3x1024xf32, #tpu.memory_space<vmem>>, %arg3: memref<1x32x3xf32, #tpu.memory_space<vmem>>, %arg4: memref<32x32xf32, #tpu.memory_space<vmem>>, %arg5: memref<32x1xf32, #tpu.memory_space<vmem>>, %arg6: memref<32x32xf32, #tpu.memory_space<vmem>>, %arg7: memref<32x1xf32, #tpu.memory_space<vmem>>, %arg8: memref<2x32xf32, #tpu.memory_space<vmem>>, %arg9: memref<2x1xf32, #tpu.memory_space<vmem>>, %arg10: memref<1x2x1024xf32, #tpu.memory_space<vmem>>) attributes {dimension_semantics = [#tpu.dimension_semantics<parallel>, #tpu.dimension_semantics<parallel>], iteration_bounds = array<i64: 2, 2>, scalar_prefetch = 0 : i64, scratch_operands = 0 : i64, tpu.core_type = #tpu.core_type<tc>, window_params = [{transform_indices = @transform_0, window_bounds = array<i64: 3, 1024>}, {transform_indices = @transform_1, window_bounds = array<i64: 1, 32, 3>}, {pipeline_mode = #tpu.pipeline_mode<synchronous>, transform_indices = @transform_2, window_bounds = array<i64: 32, 32>}, {pipeline_mode = #tpu.pipeline_mode<synchronous>, transform_indices = @transform_3, window_bounds = array<i64: 32, 1>}, {pipeline_mode = #tpu.pipeline_mode<synchronous>, transform_indices = @transform_4, window_bounds = array<i64: 32, 32>}, {pipeline_mode = #tpu.pipeline_mode<synchronous>, transform_indices = @transform_5, window_bounds = array<i64: 32, 1>}, {pipeline_mode = #tpu.pipeline_mode<synchronous>, transform_indices = @transform_6, window_bounds = array<i64: 2, 32>}, {pipeline_mode = #tpu.pipeline_mode<synchronous>, transform_indices = @transform_7, window_bounds = array<i64: 2, 1>}, {transform_indices = @transform_8, window_bounds = array<i64: 1, 2, 1024>}]} {
    %c0 = arith.constant 0 : index
    %c0_0 = arith.constant 0 : index
    %0 = vector.load %arg2[%c0, %c0_0] : memref<3x1024xf32, #tpu.memory_space<vmem>>, vector<3x1024xf32>
    %c0_1 = arith.constant 0 : index
    %c0_2 = arith.constant 0 : index
    %c0_3 = arith.constant 0 : index
    %1 = vector.load %arg3[%c0_1, %c0_2, %c0_3] : memref<1x32x3xf32, #tpu.memory_space<vmem>>, vector<1x32x3xf32>
    %2 = vector.shape_cast %1 : vector<1x32x3xf32> to vector<32x3xf32>
    %cst = arith.constant dense<0.000000e+00> : vector<32x1024xf32>
    %3 = tpu.matmul %2, %0, %cst {dimension_numbers = #tpu.dot_dimension_numbers<[1], [0], [0], [1], [0, 0, 1, 1], [], []>} : vector<32x3xf32>, vector<3x1024xf32>, vector<32x1024xf32> -> vector<32x1024xf32>
    %cst_4 = arith.constant 0.000000e+00 : f32
    %4 = vector.broadcast %cst_4 : f32 to vector<32x1024xf32>
    %5 = arith.maximumf %3, %4 : vector<32x1024xf32>
    %c0_5 = arith.constant 0 : index
    %c0_6 = arith.constant 0 : index
    %6 = vector.load %arg4[%c0_5, %c0_6] : memref<32x32xf32, #tpu.memory_space<vmem>>, vector<32x32xf32>
    %cst_7 = arith.constant dense<0.000000e+00> : vector<32x1024xf32>
    %7 = tpu.matmul %6, %5, %cst_7 {dimension_numbers = #tpu.dot_dimension_numbers<[1], [0], [0], [1], [0, 0, 1, 1], [], []>} : vector<32x32xf32>, vector<32x1024xf32>, vector<32x1024xf32> -> vector<32x1024xf32>
    %8 = arith.addf %5, %7 : vector<32x1024xf32>
    %c0_8 = arith.constant 0 : index
    %c0_9 = arith.constant 0 : index
    %9 = vector.load %arg5[%c0_8, %c0_9] : memref<32x1xf32, #tpu.memory_space<vmem>>, vector<32x1xf32>
    %10 = vector.broadcast %9 : vector<32x1xf32> to vector<32x1024xf32>
    %11 = arith.addf %8, %10 : vector<32x1024xf32>
    %cst_10 = arith.constant 0.000000e+00 : f32
    %12 = vector.broadcast %cst_10 : f32 to vector<32x1024xf32>
    %13 = arith.maximumf %11, %12 : vector<32x1024xf32>
    %c0_11 = arith.constant 0 : index
    %c0_12 = arith.constant 0 : index
    %14 = vector.load %arg6[%c0_11, %c0_12] : memref<32x32xf32, #tpu.memory_space<vmem>>, vector<32x32xf32>
    %cst_13 = arith.constant dense<0.000000e+00> : vector<32x1024xf32>
    %15 = tpu.matmul %14, %13, %cst_13 {dimension_numbers = #tpu.dot_dimension_numbers<[1], [0], [0], [1], [0, 0, 1, 1], [], []>} : vector<32x32xf32>, vector<32x1024xf32>, vector<32x1024xf32> -> vector<32x1024xf32>
    %16 = arith.addf %13, %15 : vector<32x1024xf32>
    %c0_14 = arith.constant 0 : index
    %c0_15 = arith.constant 0 : index
    %17 = vector.load %arg7[%c0_14, %c0_15] : memref<32x1xf32, #tpu.memory_space<vmem>>, vector<32x1xf32>
    %18 = vector.broadcast %17 : vector<32x1xf32> to vector<32x1024xf32>
    %19 = arith.addf %16, %18 : vector<32x1024xf32>
    %cst_16 = arith.constant 0.000000e+00 : f32
    %20 = vector.broadcast %cst_16 : f32 to vector<32x1024xf32>
    %21 = arith.maximumf %19, %20 : vector<32x1024xf32>
    %c0_17 = arith.constant 0 : index
    %c0_18 = arith.constant 0 : index
    %22 = vector.load %arg8[%c0_17, %c0_18] : memref<2x32xf32, #tpu.memory_space<vmem>>, vector<2x32xf32>
    %cst_19 = arith.constant dense<0.000000e+00> : vector<2x1024xf32>
    %23 = tpu.matmul %22, %21, %cst_19 {dimension_numbers = #tpu.dot_dimension_numbers<[1], [0], [0], [1], [0, 0, 1, 1], [], []>} : vector<2x32xf32>, vector<32x1024xf32>, vector<2x1024xf32> -> vector<2x1024xf32>
    %c0_20 = arith.constant 0 : index
    %c0_21 = arith.constant 0 : index
    %24 = vector.load %arg9[%c0_20, %c0_21] : memref<2x1xf32, #tpu.memory_space<vmem>>, vector<2x1xf32>
    %25 = vector.broadcast %24 : vector<2x1xf32> to vector<2x1024xf32>
    %26 = arith.addf %23, %25 : vector<2x1024xf32>
    %27 = math.tanh %26 : vector<2x1024xf32>
    %c0_22 = arith.constant 0 : index
    %c0_23 = arith.constant 0 : index
    %c0_24 = arith.constant 0 : index
    %28 = vector.load %arg10[%c0_22, %c0_23, %c0_24] : memref<1x2x1024xf32, #tpu.memory_space<vmem>>, vector<1x2x1024xf32>
    %29 = vector.shape_cast %28 : vector<1x2x1024xf32> to vector<2x1024xf32>
    %30 = vector.shape_cast %27 : vector<2x1024xf32> to vector<1x2x1024xf32>
    tpu.vector_store %arg10[%c0_22, %c0_23, %c0_24], %30 {strides = array<i32>} : memref<1x2x1024xf32, #tpu.memory_space<vmem>>, vector<1x2x1024xf32>,
    return
  }
  func.func @transform_0(%arg0: i32, %arg1: i32) -> (i32, i32) {
    %c0_i32 = arith.constant 0 : i32
    %c0_i32_0 = arith.constant 0 : i32
    return %c0_i32, %arg1 : i32, i32
  }
  func.func @transform_1(%arg0: i32, %arg1: i32) -> (i32, i32, i32) {
    %c0_i32 = arith.constant 0 : i32
    %c0_i32_0 = arith.constant 0 : i32
    %c0_i32_1 = arith.constant 0 : i32
    return %arg0, %c0_i32, %c0_i32_0 : i32, i32, i32
  }
  func.func @transform_2(%arg0: i32, %arg1: i32) -> (i32, i32) {
    %c0_i32 = arith.constant 0 : i32
    %c0_i32_0 = arith.constant 0 : i32
    %c0_i32_1 = arith.constant 0 : i32
    return %c0_i32, %c0_i32_0 : i32, i32
  }
  func.func @transform_3(%arg0: i32, %arg1: i32) -> (i32, i32) {
    %c0_i32 = arith.constant 0 : i32
    %c0_i32_0 = arith.constant 0 : i32
    %c0_i32_1 = arith.constant 0 : i32
    return %c0_i32, %c0_i32_0 : i32, i32
  }
  func.func @transform_4(%arg0: i32, %arg1: i32) -> (i32, i32) {
    %c0_i32 = arith.constant 0 : i32
    %c0_i32_0 = arith.constant 0 : i32
    %c0_i32_1 = arith.constant 0 : i32
    return %c0_i32, %c0_i32_0 : i32, i32
  }
  func.func @transform_5(%arg0: i32, %arg1: i32) -> (i32, i32) {
    %c0_i32 = arith.constant 0 : i32
    %c0_i32_0 = arith.constant 0 : i32
    %c0_i32_1 = arith.constant 0 : i32
    return %c0_i32, %c0_i32_0 : i32, i32
  }
  func.func @transform_6(%arg0: i32, %arg1: i32) -> (i32, i32) {
    %c0_i32 = arith.constant 0 : i32
    %c0_i32_0 = arith.constant 0 : i32
    %c0_i32_1 = arith.constant 0 : i32
    return %c0_i32, %c0_i32_0 : i32, i32
  }
  func.func @transform_7(%arg0: i32, %arg1: i32) -> (i32, i32) {
    %c0_i32 = arith.constant 0 : i32
    %c0_i32_0 = arith.constant 0 : i32
    %c0_i32_1 = arith.constant 0 : i32
    return %c0_i32, %c0_i32_0 : i32, i32
  }
  func.func @transform_8(%arg0: i32, %arg1: i32) -> (i32, i32, i32) {
    %c0_i32 = arith.constant 0 : i32
    %c0_i32_0 = arith.constant 0 : i32
    return %arg0, %c0_i32, %arg1 : i32, i32, i32
  }
}

</mosaic_0001>

<llo_original>
// kernel: tpu_custom_call.1
$region0: #{tpu_custom_call.1}
  #allocation0 [shape = 'u32[]', space=smem, size = 0x4, offset = 0x4, fixed_abs, tag = 'smem constant byte address 0x4 - core index']
  #allocation1 [shape = 'u32[144,128]{1,0:T(1,128)}', space=vmem, size = 0x12000, scoped, tag = 'internal scratch']
  %s0 = inlined_call_operand.vmem [shape: f32[3,2048], index: 0, kind: input, shape index: {}]
  %s1 = inlined_call_operand.vmem [shape: f32[2,32,3], index: 1, kind: input, shape index: {}]
  %s2 = inlined_call_operand.vmem [shape: f32[32,32], index: 2, kind: input, shape index: {}]
  %s3 = inlined_call_operand.vmem [shape: f32[32,1], index: 3, kind: input, shape index: {}]
  %s4 = inlined_call_operand.vmem [shape: f32[32,32], index: 4, kind: input, shape index: {}]
  %s5 = inlined_call_operand.vmem [shape: f32[32,1], index: 5, kind: input, shape index: {}]
  %s6 = inlined_call_operand.vmem [shape: f32[2,32], index: 6, kind: input, shape index: {}]
  %s7 = inlined_call_operand.vmem [shape: f32[2,1], index: 7, kind: input, shape index: {}]
  %s8 = inlined_call_operand.hbm [shape: f32[2,2,2048], index: 8, kind: output, shape index: {}]
  %s9 = sld [smem:[#allocation0]]
  $region65: #{tpu_custom_call.1} parent=0
    _
  %s11 = ssub.s32 1, %s9
  %s12 = scalar_select 0, %s11, %s9
  $region1: #{tpu_custom_call.1} parent=0
    #allocation2 [shape = 'u8[16384]{0}', space=vmem, size = 0x4000, scoped, tag = 'output window, operand 0']
    #allocation3 [shape = 's32[2]{0}', space=sflag, size = 0x8, scoped, tag = 'scoped memory for tpu_custom_call.1']
    %13 = vsyncpa [#allocation3], 0
    %s14 = scalar_lea.sflag [#allocation3], 1
    %15 = vsyncpa %s14, 0
    loop: start=0, step=1, limit=6
    $region2: #{tpu_custom_call.1} parent=1 // loop_pre_header
      _
    $region3: #{tpu_custom_call.1} parent=1 // loop_header
      %s17 = sphi 0, %s21
      %p18 = scmp.ge.s32.totalorder %s17, 6
      %s24 = sphi 0, %s36
      %s25 = sphi 0, %s32
      %s26 = sphi 0, %s24
      %s27 = sphi 0, %s25
      %s28 = sphi 0, %s26
      %s29 = sphi 0, %s27
      %s39 = sphi 0, %s41
      %s42 = sphi 0, %s39
      %s43 = sphi 0, %s42
      %s59 = sphi 0, %s43
      %s65 = sphi 0, %s67
      %s68 = sphi 0, %s65
      %s69 = sphi 0, %s68
      %s85 = sphi 0, %s69
      %s89 = sphi 0, %s89
      %s91 = sphi 0, %s89
      %s92 = sphi 0, %s91
      %s106 = sphi 0, %s92
      %s110 = sphi 0, %s110
      %s112 = sphi 0, %s110
      %s113 = sphi 0, %s112
      %s127 = sphi 0, %s113
      %s131 = sphi 0, %s131
      %s133 = sphi 0, %s131
      %s134 = sphi 0, %s133
      %s148 = sphi 0, %s134
      %s152 = sphi 0, %s152
      %s154 = sphi 0, %s152
      %s155 = sphi 0, %s154
      %s169 = sphi 0, %s155
      %s173 = sphi 0, %s173
      %s175 = sphi 0, %s173
      %s176 = sphi 0, %s175
      %s190 = sphi 0, %s176
      %s194 = sphi 0, %s194
      %s196 = sphi 0, %s194
      %s197 = sphi 0, %s196
      %s211 = sphi 0, %s197
      %s219 = sphi 0, %s221
      %s222 = sphi 0, %s219
      %s223 = sphi 0, %s222
      %s239 = sphi 0, %s223
    $region4: #{tpu_custom_call.1} parent=1 // loop_header_branch
      %20 = sbr.rel (%p18) target = $region8
    $region5: #{tpu_custom_call.1} parent=1 // loop_body
      %s22 = ssub.s32 %s17, 1
      %s23 = ssub.s32 %s17, 2
      %s30 = sadd.s32 1, %s25
      %p31 = scmp.ge.s32.totalorder %s30, 2
      %s32 = scalar_select %p31, 0, %s30
      %s33 = sadd.s32 1, %s24
      %s34 = scalar_select %p31, %s33, %s24
      %p35 = scmp.ge.s32.totalorder %s34, 2
      %s36 = scalar_select %p35, 0, %s34
      %s37 = ssub.s32 %s25, %s32
      %p38 = scmp.eq.s32.totalorder %s37, 0
      %s40 = sadd.s32 %s39, 1
      %s41 = scalar_select %p38, %s39, %s40
      %p44 = pneg %p38
      %p45 = scmp.eq.s32.totalorder %s17, 3
      %p46 = por %p44, %p45
      %p47 = scmp.ne.s32.totalorder %s39, %s42
      %p48 = scmp.eq.s32.totalorder %s17, 0
      %p49 = por %p47, %p48
      %p50 = scmp.ne.s32.totalorder %s39, %s42
      %p51 = scmp.eq.s32.totalorder %s22, 3
      %p52 = por %p50, %p51
      %p53 = scmp.ne.s32.totalorder %s42, %s43
      %p54 = scmp.eq.s32.totalorder %s22, 0
      %p55 = por %p53, %p54
      %p56 = scmp.ne.s32.totalorder %s42, %s43
      %p57 = scmp.eq.s32.totalorder %s23, 3
      %p58 = por %p56, %p57
      %p60 = scmp.ne.s32.totalorder %s43, %s59
      %p61 = scmp.eq.s32.totalorder %s23, 0
      %p62 = por %p60, %p61
      %s63 = ssub.s32 %s24, %s36
      %p64 = scmp.eq.s32.totalorder %s63, 0
      %s66 = sadd.s32 %s65, 1
      %s67 = scalar_select %p64, %s65, %s66
      %p70 = pneg %p64
      %p71 = scmp.eq.s32.totalorder %s17, 3
      %p72 = por %p70, %p71
      %p73 = scmp.ne.s32.totalorder %s65, %s68
      %p74 = scmp.eq.s32.totalorder %s17, 0
      %p75 = por %p73, %p74
      %p76 = scmp.ne.s32.totalorder %s65, %s68
      %p77 = scmp.eq.s32.totalorder %s22, 3
      %p78 = por %p76, %p77
      %p79 = scmp.ne.s32.totalorder %s68, %s69
      %p80 = scmp.eq.s32.totalorder %s22, 0
      %p81 = por %p79, %p80
      %p82 = scmp.ne.s32.totalorder %s68, %s69
      %p83 = scmp.eq.s32.totalorder %s23, 3
      %p84 = por %p82, %p83
      %p86 = scmp.ne.s32.totalorder %s69, %s85
      %p87 = scmp.eq.s32.totalorder %s23, 0
      %p88 = por %p86, %p87
      %s90 = sadd.s32 %s89, 1
      %p93 = scmp.eq.s32.totalorder %s17, 3
      %p94 = scmp.ne.s32.totalorder %s89, %s91
      %p95 = scmp.eq.s32.totalorder %s17, 0
      %p96 = por %p94, %p95
      %p97 = scmp.ne.s32.totalorder %s89, %s91
      %p98 = scmp.eq.s32.totalorder %s22, 3
      %p99 = por %p97, %p98
      %p100 = scmp.ne.s32.totalorder %s91, %s92
      %p101 = scmp.eq.s32.totalorder %s22, 0
      %p102 = por %p100, %p101
      %p103 = scmp.ne.s32.totalorder %s91, %s92
      %p104 = scmp.eq.s32.totalorder %s23, 3
      %p105 = por %p103, %p104
      %p107 = scmp.ne.s32.totalorder %s92, %s106
      %p108 = scmp.eq.s32.totalorder %s23, 0
      %p109 = por %p107, %p108
      %s111 = sadd.s32 %s110, 1
      %p114 = scmp.eq.s32.totalorder %s17, 3
      %p115 = scmp.ne.s32.totalorder %s110, %s112
      %p116 = scmp.eq.s32.totalorder %s17, 0
      %p117 = por %p115, %p116
      %p118 = scmp.ne.s32.totalorder %s110, %s112
      %p119 = scmp.eq.s32.totalorder %s22, 3
      %p120 = por %p118, %p119
      %p121 = scmp.ne.s32.totalorder %s112, %s113
      %p122 = scmp.eq.s32.totalorder %s22, 0
      %p123 = por %p121, %p122
      %p124 = scmp.ne.s32.totalorder %s112, %s113
      %p125 = scmp.eq.s32.totalorder %s23, 3
      %p126 = por %p124, %p125
      %p128 = scmp.ne.s32.totalorder %s113, %s127
      %p129 = scmp.eq.s32.totalorder %s23, 0
      %p130 = por %p128, %p129
      %s132 = sadd.s32 %s131, 1
      %p135 = scmp.eq.s32.totalorder %s17, 3
      %p136 = scmp.ne.s32.totalorder %s131, %s133
      %p137 = scmp.eq.s32.totalorder %s17, 0
      %p138 = por %p136, %p137
      %p139 = scmp.ne.s32.totalorder %s131, %s133
      %p140 = scmp.eq.s32.totalorder %s22, 3
      %p141 = por %p139, %p140
      %p142 = scmp.ne.s32.totalorder %s133, %s134
      %p143 = scmp.eq.s32.totalorder %s22, 0
      %p144 = por %p142, %p143
      %p145 = scmp.ne.s32.totalorder %s133, %s134
      %p146 = scmp.eq.s32.totalorder %s23, 3
      %p147 = por %p145, %p146
      %p149 = scmp.ne.s32.totalorder %s134, %s148
      %p150 = scmp.eq.s32.totalorder %s23, 0
      %p151 = por %p149, %p150
      %s153 = sadd.s32 %s152, 1
      %p156 = scmp.eq.s32.totalorder %s17, 3
      %p157 = scmp.ne.s32.totalorder %s152, %s154
      %p158 = scmp.eq.s32.totalorder %s17, 0
      %p159 = por %p157, %p158
      %p160 = scmp.ne.s32.totalorder %s152, %s154
      %p161 = scmp.eq.s32.totalorder %s22, 3
      %p162 = por %p160, %p161
      %p163 = scmp.ne.s32.totalorder %s154, %s155
      %p164 = scmp.eq.s32.totalorder %s22, 0
      %p165 = por %p163, %p164
      %p166 = scmp.ne.s32.totalorder %s154, %s155
      %p167 = scmp.eq.s32.totalorder %s23, 3
      %p168 = por %p166, %p167
      %p170 = scmp.ne.s32.totalorder %s155, %s169
      %p171 = scmp.eq.s32.totalorder %s23, 0
      %p172 = por %p170, %p171
      %s174 = sadd.s32 %s173, 1
      %p177 = scmp.eq.s32.totalorder %s17, 3
      %p178 = scmp.ne.s32.totalorder %s173, %s175
      %p179 = scmp.eq.s32.totalorder %s17, 0
      %p180 = por %p178, %p179
      %p181 = scmp.ne.s32.totalorder %s173, %s175
      %p182 = scmp.eq.s32.totalorder %s22, 3
      %p183 = por %p181, %p182
      %p184 = scmp.ne.s32.totalorder %s175, %s176
      %p185 = scmp.eq.s32.totalorder %s22, 0
      %p186 = por %p184, %p185
      %p187 = scmp.ne.s32.totalorder %s175, %s176
      %p188 = scmp.eq.s32.totalorder %s23, 3
      %p189 = por %p187, %p188
      %p191 = scmp.ne.s32.totalorder %s176, %s190
      %p192 = scmp.eq.s32.totalorder %s23, 0
      %p193 = por %p191, %p192
      %s195 = sadd.s32 %s194, 1
      %p198 = scmp.eq.s32.totalorder %s17, 3
      %p199 = scmp.ne.s32.totalorder %s194, %s196
      %p200 = scmp.eq.s32.totalorder %s17, 0
      %p201 = por %p199, %p200
      %p202 = scmp.ne.s32.totalorder %s194, %s196
      %p203 = scmp.eq.s32.totalorder %s22, 3
      %p204 = por %p202, %p203
      %p205 = scmp.ne.s32.totalorder %s196, %s197
      %p206 = scmp.eq.s32.totalorder %s22, 0
      %p207 = por %p205, %p206
      %p208 = scmp.ne.s32.totalorder %s196, %s197
      %p209 = scmp.eq.s32.totalorder %s23, 3
      %p210 = por %p208, %p209
      %p212 = scmp.ne.s32.totalorder %s197, %s211
      %p213 = scmp.eq.s32.totalorder %s23, 0
      %p214 = por %p212, %p213
      %s215 = ssub.s32 %s24, %s36
      %s216 = ssub.s32 %s25, %s32
      %s217 = sor.u32 %s215, %s216
      %p218 = scmp.eq.s32.totalorder %s217, 0
      %s220 = sadd.s32 %s219, 1
      %s221 = scalar_select %p218, %s219, %s220
      %p224 = pneg %p218
      %p225 = scmp.eq.s32.totalorder %s17, 3
      %p226 = por %p224, %p225
      %p227 = scmp.ne.s32.totalorder %s219, %s222
      %p228 = scmp.eq.s32.totalorder %s17, 0
      %p229 = por %p227, %p228
      %p230 = scmp.ne.s32.totalorder %s219, %s222
      %p231 = scmp.eq.s32.totalorder %s22, 3
      %p232 = por %p230, %p231
      %p233 = scmp.ne.s32.totalorder %s222, %s223
      %p234 = scmp.eq.s32.totalorder %s22, 0
      %p235 = por %p233, %p234
      %p236 = scmp.ne.s32.totalorder %s222, %s223
      %p237 = scmp.eq.s32.totalorder %s23, 3
      %p238 = por %p236, %p237
      %p240 = scmp.ne.s32.totalorder %s223, %s239
      %p241 = scmp.eq.s32.totalorder %s23, 0
      %p242 = por %p240, %p241
      %p243 = scmp.le.s32.totalorder 1, %s17
      %p244 = scmp.lt.s32.totalorder %s17, 5
      %p245 = pnand %p243, %p244
      %p246 = pneg %p245
      // Predicated region
      $region9: #{tpu_custom_call.1} parent=5 // pred_check
        _
      $region10: #{tpu_custom_call.1} parent=5 // pred_check_branch
        %248 = sbr.rel (%p245) target = $region12
      $region11: #{tpu_custom_call.1} parent=5 // pred_region
        %s249 = ssub.s32 %s17, 1
        // Predicated region
        $region13: #{tpu_custom_call.1} parent=11 // pred_check
          %p250 = pneg %p102
        $region14: #{tpu_custom_call.1} parent=11 // pred_check_branch
          %252 = sbr.rel (%p250) target = $region16
        $region15: #{tpu_custom_call.1} parent=11 // pred_region
          _
        $region16: #{tpu_custom_call.1} parent=11 // pred_fallthru
          _
        // Predicated region
        $region17: #{tpu_custom_call.1} parent=11 // pred_check
          %p253 = pneg %p123
        $region18: #{tpu_custom_call.1} parent=11 // pred_check_branch
          %255 = sbr.rel (%p253) target = $region20
        $region19: #{tpu_custom_call.1} parent=11 // pred_region
          _
        $region20: #{tpu_custom_call.1} parent=11 // pred_fallthru
          _
        // Predicated region
        $region21: #{tpu_custom_call.1} parent=11 // pred_check
          %p256 = pneg %p144
        $region22: #{tpu_custom_call.1} parent=11 // pred_check_branch
          %258 = sbr.rel (%p256) target = $region24
        $region23: #{tpu_custom_call.1} parent=11 // pred_region
          _
        $region24: #{tpu_custom_call.1} parent=11 // pred_fallthru
          _
        // Predicated region
        $region25: #{tpu_custom_call.1} parent=11 // pred_check
          %p259 = pneg %p165
        $region26: #{tpu_custom_call.1} parent=11 // pred_check_branch
          %261 = sbr.rel (%p259) target = $region28
        $region27: #{tpu_custom_call.1} parent=11 // pred_region
          _
        $region28: #{tpu_custom_call.1} parent=11 // pred_fallthru
          _
        // Predicated region
        $region29: #{tpu_custom_call.1} parent=11 // pred_check
          %p262 = pneg %p186
        $region30: #{tpu_custom_call.1} parent=11 // pred_check_branch
          %264 = sbr.rel (%p262) target = $region32
        $region31: #{tpu_custom_call.1} parent=11 // pred_region
          _
        $region32: #{tpu_custom_call.1} parent=11 // pred_fallthru
          _
        // Predicated region
        $region33: #{tpu_custom_call.1} parent=11 // pred_check
          %p265 = pneg %p207
        $region34: #{tpu_custom_call.1} parent=11 // pred_check_branch
          %267 = sbr.rel (%p265) target = $region36
        $region35: #{tpu_custom_call.1} parent=11 // pred_region
          _
        $region36: #{tpu_custom_call.1} parent=11 // pred_fallthru
          _
      $region12: #{tpu_custom_call.1} parent=5 // pred_fallthru
        _
      %p268 = scmp.lt.s32.totalorder %s17, 4
      // Predicated region
      $region37: #{tpu_custom_call.1} parent=5 // pred_check
        %p269 = pneg %p268
      $region38: #{tpu_custom_call.1} parent=5 // pred_check_branch
        %271 = sbr.rel (%p269) target = $region40
      $region39: #{tpu_custom_call.1} parent=5 // pred_region
        // Predicated region
        $region41: #{tpu_custom_call.1} parent=39 // pred_check
          %p272 = pneg %p49
        $region42: #{tpu_custom_call.1} parent=39 // pred_check_branch
          %274 = sbr.rel (%p272) target = $region44
        $region43: #{tpu_custom_call.1} parent=39 // pred_region
          %s275 = smul.u32 8, %s25
          %p276 = scmp.lt.s32.totalorder %s275, 15
          %s277 = scalar_select %p276, %s275, 15
          %s278 = smul.addr %s277, 4
          %s279 = scalar_lea.vmem %s0, %s278
          %s280 = smul.u32 8, %s25
        $region44: #{tpu_custom_call.1} parent=39 // pred_fallthru
          _
        // Predicated region
        $region45: #{tpu_custom_call.1} parent=39 // pred_check
          %p281 = pneg %p75
        $region46: #{tpu_custom_call.1} parent=39 // pred_check_branch
          %283 = sbr.rel (%p281) target = $region48
        $region47: #{tpu_custom_call.1} parent=39 // pred_region
          %p284 = scmp.lt.s32.totalorder %s24, 1
          %s285 = scalar_select %p284, %s24, 1
          %s286 = smul.addr %s285, 4
          %s287 = smul.addr %s286, 8
          %s288 = scalar_lea.vmem %s1, %s287
        $region48: #{tpu_custom_call.1} parent=39 // pred_fallthru
          _
      $region40: #{tpu_custom_call.1} parent=5 // pred_fallthru
        _
      %p289 = scmp.le.s32.totalorder 1, %s17
      %p290 = scmp.lt.s32.totalorder %s17, 5
      %p291 = pnand %p289, %p290
      %p292 = pneg %p291
      // Predicated region
      $region49: #{tpu_custom_call.1} parent=5 // pred_check
        _
      $region50: #{tpu_custom_call.1} parent=5 // pred_check_branch
        %294 = sbr.rel (%p291) target = $region52
      $region51: #{tpu_custom_call.1} parent=5 // pred_region
        %s295 = ssub.s32 %s17, 1
        %s296 = smul.u32 8, %s27
        %p297 = scmp.lt.s32.totalorder %s296, 15
        %s298 = scalar_select %p297, %s296, 15
        %s299 = smul.addr %s298, 4
        %s300 = scalar_lea.vmem %s0, %s299
        %p301 = pneg %p55
        %p302 = pneg %p52
        %p303 = scmp.lt.s32.totalorder %s26, 1
        %s304 = scalar_select %p303, %s26, 1
        %s305 = smul.addr %s304, 4
        %s306 = smul.addr %s305, 8
        %s307 = scalar_lea.vmem %s1, %s306
        %p308 = pneg %p81
        %p309 = pneg %p78
        %p310 = pneg %p102
        %p311 = pneg %p99
        %p312 = pneg %p123
        %p313 = pneg %p120
        %p314 = pneg %p144
        %p315 = pneg %p141
        %p316 = pneg %p165
        %p317 = pneg %p162
        %p318 = pneg %p186
        %p319 = pneg %p183
        %p320 = pneg %p207
        %p321 = pneg %p204
        %p322 = pneg %p235
        %p323 = pneg %p232
        %s324 = sand.u32 %s222, 1
        %s325 = scalar_lea.sflag [#allocation3], %s324
        %s326 = sand.u32 %s222, 1
        %s327 = smul.addr %s326, 16
        %s328 = scalar_lea.vmem [#allocation2], %s327
        %s329 = smul.u32 8, %s27
        %p330 = scmp.lt.s32.totalorder %s329, 15
        %s331 = scalar_select %p330, %s329, 15
        %s332 = smul.addr %s331, 4
        %s333 = scalar_lea.vmem %s0, %s332
        %s334 = smul.u32 8, %s27
        %p335 = scmp.lt.s32.totalorder %s26, 1
        %s336 = scalar_select %p335, %s26, 1
        %s337 = smul.addr %s336, 4
        %s338 = smul.addr %s337, 8
        %s339 = scalar_lea.vmem %s1, %s338
        %s340 = smul.u32 8, %s27
        %v341 = vld [vmem:[%s333] sm:$0x77]
        %v342 = vld [vmem:[%s333 + $0x8] sm:$0x77]
        %v343 = vld [vmem:[%s333 + $0x10] sm:$0x77]
        %v344 = vld [vmem:[%s333 + $0x18] sm:$0x77]
        %v345 = vld [vmem:[%s339] sm:$0xff]
        %v346 = vld [vmem:[%s339 + $0x8] sm:$0xff]
        %v347 = vld [vmem:[%s339 + $0x10] sm:$0xff]
        %v348 = vld [vmem:[%s339 + $0x18] sm:$0xff]
        %v353 = vcombine.high %v341, %v341
        %v354 = vcombine.high %v342, %v342
        %v355 = vcombine.high %v343, %v343
        %v356 = vcombine.high %v344, %v344
        %vm357 = vcmask 23552
        %v359 = vsel %vm357, %v345, 0
        %v362 = vsel %vm357, %v346, 0
        %v365 = vsel %vm357, %v347, 0
        %v368 = vsel %vm357, %v348, 0
        %vm370 = vcmask 1042432
        %v371 = vsel %vm370, %v341, 0
        %v373 = vsel %vm370, %v353, 0
        %v375 = vsel %vm370, %v342, 0
        %v377 = vsel %vm370, %v354, 0
        %v379 = vsel %vm370, %v343, 0
        %v381 = vsel %vm370, %v355, 0
        %v383 = vsel %vm370, %v344, 0
        %v385 = vsel %vm370, %v356, 0
        %387 = vmatprep.subr.mxu0 0.0
        %388 = vmatpush1.msra.mxu0 0.0
        %389 = vmatprep.subr.mxu0 0.0
        %390 = vmatpush1.msra.mxu0 0.0
        %391 = vmatprep.subr.mxu0 0.0
        %392 = vmatpush1.msra.mxu0 0.0
        %393 = vmatprep.subr.mxu0 0.0
        %394 = vmatpush1.msra.mxu0 0.0
        %395 = vmatprep.subr.mxu0 0.0
        %396 = vmatpush1.msra.mxu0 0.0
        %397 = vmatprep.subr.mxu0 0.0
        %398 = vmatpush1.msra.mxu0 0.0
        %399 = vmatprep.subr.mxu0 0.0
        %400 = vmatpush1.msra.mxu0 0.0
        %401 = vmatprep.subr.mxu0 0.0
        %402 = vmatpush1.msra.mxu0 0.0
        %403 = vmatprep.subr.mxu0 0.0
        %404 = vmatpush1.msra.mxu0 0.0
        %405 = vmatprep.subr.mxu0 0.0
        %406 = vmatpush1.msra.mxu0 0.0
        %407 = vmatprep.subr.mxu0 0.0
        %408 = vmatpush1.msra.mxu0 0.0
        %409 = vmatprep.subr.mxu0 0.0
        %410 = vmatpush1.msra.mxu0 0.0
        %411 = vmatprep.subr.mxu0 0.0
        %412 = vmatpush1.msra.mxu0 0.0
        %413 = vmatprep.subr.mxu0 0.0
        %414 = vmatpush1.msra.mxu0 0.0
        %415 = vmatprep.subr.mxu0 0.0
        %416 = vmatpush1.msra.mxu0 0.0
        %417 = vmatprep.subr.mxu0 %v373
        %418 = vmatpush1.msra.mxu0 %v371
        %419 = vmatprep.subr.mxu0 0.0
        %420 = vmatpush2.msra.mxu0 0.0
        %421 = vmatprep.subr.mxu0 0.0
        %422 = vmatpush2.msra.mxu0 0.0
        %423 = vmatprep.subr.mxu0 0.0
        %424 = vmatpush2.msra.mxu0 0.0
        %425 = vmatprep.subr.mxu0 0.0
        %426 = vmatpush2.msra.mxu0 0.0
        %427 = vmatprep.subr.mxu0 0.0
        %428 = vmatpush2.msra.mxu0 0.0
        %429 = vmatprep.subr.mxu0 0.0
        %430 = vmatpush2.msra.mxu0 0.0
        %431 = vmatprep.subr.mxu0 0.0
        %432 = vmatpush2.msra.mxu0 0.0
        %433 = vmatprep.subr.mxu0 0.0
        %434 = vmatpush2.msra.mxu0 0.0
        %435 = vmatprep.subr.mxu0 0.0
        %436 = vmatpush2.msra.mxu0 0.0
        %437 = vmatprep.subr.mxu0 0.0
        %438 = vmatpush2.msra.mxu0 0.0
        %439 = vmatprep.subr.mxu0 0.0
        %440 = vmatpush2.msra.mxu0 0.0
        %441 = vmatprep.subr.mxu0 0.0
        %442 = vmatpush2.msra.mxu0 0.0
        %443 = vmatprep.subr.mxu0 0.0
        %444 = vmatpush2.msra.mxu0 0.0
        %445 = vmatprep.subr.mxu0 0.0
        %446 = vmatpush2.msra.mxu0 0.0
        %447 = vmatprep.subr.mxu0 0.0
        %448 = vmatpush2.msra.mxu0 0.0
        %449 = vmatprep.subr.mxu0 0.0
        %450 = vmatpush2.msra.mxu0 0.0
        %451 = vmatprep.mubr.f32.mxu0 0.0
        %452 = vmatmul.mubr.f32.gmra.mxu0 %v359
        %v453 = vpop.f32.mrf.mxu0
        %v454 = vadd.f32 0.0, %v453
        %v455 = vpop.f32.mrf.mxu0
        %v456 = vadd.f32 0.0, %v455
        %457 = vmatprep.mubr.f32.mxu0 0.0
        %458 = vmatmul.mubr.f32.gmra.mxu0 %v362
        %v459 = vpop.f32.mrf.mxu0
        %v460 = vadd.f32 0.0, %v459
        %v461 = vpop.f32.mrf.mxu0
        %v462 = vadd.f32 0.0, %v461
        %463 = vmatprep.mubr.f32.mxu0 0.0
        %464 = vmatmul.mubr.f32.gmra.mxu0 %v365
        %v465 = vpop.f32.mrf.mxu0
        %v466 = vadd.f32 0.0, %v465
        %v467 = vpop.f32.mrf.mxu0
        %v468 = vadd.f32 0.0, %v467
        %469 = vmatprep.mubr.f32.mxu0 0.0
        %470 = vmatmul.mubr.f32.gmra.mxu0 %v368
        %v471 = vpop.f32.mrf.mxu0
        %v472 = vadd.f32 0.0, %v471
        %v473 = vpop.f32.mrf.mxu0
        %v474 = vadd.f32 0.0, %v473
        %475 = vdwg.mxu0
        %476 = vmatprep.subr.mxu0 0.0
        %477 = vmatpush1.msra.mxu0 0.0
        %478 = vmatprep.subr.mxu0 0.0
        %479 = vmatpush1.msra.mxu0 0.0
        %480 = vmatprep.subr.mxu0 0.0
        %481 = vmatpush1.msra.mxu0 0.0
        %482 = vmatprep.subr.mxu0 0.0
        %483 = vmatpush1.msra.mxu0 0.0
        %484 = vmatprep.subr.mxu0 0.0
        %485 = vmatpush1.msra.mxu0 0.0
        %486 = vmatprep.subr.mxu0 0.0
        %487 = vmatpush1.msra.mxu0 0.0
        %488 = vmatprep.subr.mxu0 0.0
        %489 = vmatpush1.msra.mxu0 0.0
        %490 = vmatprep.subr.mxu0 0.0
        %491 = vmatpush1.msra.mxu0 0.0
        %492 = vmatprep.subr.mxu0 0.0
        %493 = vmatpush1.msra.mxu0 0.0
        %494 = vmatprep.subr.mxu0 0.0
        %495 = vmatpush1.msra.mxu0 0.0
        %496 = vmatprep.subr.mxu0 0.0
        %497 = vmatpush1.msra.mxu0 0.0
        %498 = vmatprep.subr.mxu0 0.0
        %499 = vmatpush1.msra.mxu0 0.0
        %500 = vmatprep.subr.mxu0 0.0
        %501 = vmatpush1.msra.mxu0 0.0
        %502 = vmatprep.subr.mxu0 0.0
        %503 = vmatpush1.msra.mxu0 0.0
        %504 = vmatprep.subr.mxu0 0.0
        %505 = vmatpush1.msra.mxu0 0.0
        %506 = vmatprep.subr.mxu0 %v377
        %507 = vmatpush1.msra.mxu0 %v375
        %508 = vmatprep.subr.mxu0 0.0
        %509 = vmatpush2.msra.mxu0 0.0
        %510 = vmatprep.subr.mxu0 0.0
        %511 = vmatpush2.msra.mxu0 0.0
        %512 = vmatprep.subr.mxu0 0.0
        %513 = vmatpush2.msra.mxu0 0.0
        %514 = vmatprep.subr.mxu0 0.0
        %515 = vmatpush2.msra.mxu0 0.0
        %516 = vmatprep.subr.mxu0 0.0
        %517 = vmatpush2.msra.mxu0 0.0
        %518 = vmatprep.subr.mxu0 0.0
        %519 = vmatpush2.msra.mxu0 0.0
        %520 = vmatprep.subr.mxu0 0.0
        %521 = vmatpush2.msra.mxu0 0.0
        %522 = vmatprep.subr.mxu0 0.0
        %523 = vmatpush2.msra.mxu0 0.0
        %524 = vmatprep.subr.mxu0 0.0
        %525 = vmatpush2.msra.mxu0 0.0
        %526 = vmatprep.subr.mxu0 0.0
        %527 = vmatpush2.msra.mxu0 0.0
        %528 = vmatprep.subr.mxu0 0.0
        %529 = vmatpush2.msra.mxu0 0.0
        %530 = vmatprep.subr.mxu0 0.0
        %531 = vmatpush2.msra.mxu0 0.0
        %532 = vmatprep.subr.mxu0 0.0
        %533 = vmatpush2.msra.mxu0 0.0
        %534 = vmatprep.subr.mxu0 0.0
        %535 = vmatpush2.msra.mxu0 0.0
        %536 = vmatprep.subr.mxu0 0.0
        %537 = vmatpush2.msra.mxu0 0.0
        %538 = vmatprep.subr.mxu0 0.0
        %539 = vmatpush2.msra.mxu0 0.0
        %540 = vmatprep.mubr.f32.mxu0 0.0
        %541 = vmatmul.mubr.f32.gmra.mxu0 %v359
        %v542 = vpop.f32.mrf.mxu0
        %v543 = vadd.f32 0.0, %v542
        %v544 = vpop.f32.mrf.mxu0
        %v545 = vadd.f32 0.0, %v544
        %546 = vmatprep.mubr.f32.mxu0 0.0
        %547 = vmatmul.mubr.f32.gmra.mxu0 %v362
        %v548 = vpop.f32.mrf.mxu0
        %v549 = vadd.f32 0.0, %v548
        %v550 = vpop.f32.mrf.mxu0
        %v551 = vadd.f32 0.0, %v550
        %552 = vmatprep.mubr.f32.mxu0 0.0
        %553 = vmatmul.mubr.f32.gmra.mxu0 %v365
        %v554 = vpop.f32.mrf.mxu0
        %v555 = vadd.f32 0.0, %v554
        %v556 = vpop.f32.mrf.mxu0
        %v557 = vadd.f32 0.0, %v556
        %558 = vmatprep.mubr.f32.mxu0 0.0
        %559 = vmatmul.mubr.f32.gmra.mxu0 %v368
        %v560 = vpop.f32.mrf.mxu0
        %v561 = vadd.f32 0.0, %v560
        %v562 = vpop.f32.mrf.mxu0
        %v563 = vadd.f32 0.0, %v562
        %564 = vdwg.mxu0
        %565 = vmatprep.subr.mxu0 0.0
        %566 = vmatpush1.msra.mxu0 0.0
        %567 = vmatprep.subr.mxu0 0.0
        %568 = vmatpush1.msra.mxu0 0.0
        %569 = vmatprep.subr.mxu0 0.0
        %570 = vmatpush1.msra.mxu0 0.0
        %571 = vmatprep.subr.mxu0 0.0
        %572 = vmatpush1.msra.mxu0 0.0
        %573 = vmatprep.subr.mxu0 0.0
        %574 = vmatpush1.msra.mxu0 0.0
        %575 = vmatprep.subr.mxu0 0.0
        %576 = vmatpush1.msra.mxu0 0.0
        %577 = vmatprep.subr.mxu0 0.0
        %578 = vmatpush1.msra.mxu0 0.0
        %579 = vmatprep.subr.mxu0 0.0
        %580 = vmatpush1.msra.mxu0 0.0
        %581 = vmatprep.subr.mxu0 0.0
        %582 = vmatpush1.msra.mxu0 0.0
        %583 = vmatprep.subr.mxu0 0.0
        %584 = vmatpush1.msra.mxu0 0.0
        %585 = vmatprep.subr.mxu0 0.0
        %586 = vmatpush1.msra.mxu0 0.0
        %587 = vmatprep.subr.mxu0 0.0
        %588 = vmatpush1.msra.mxu0 0.0
        %589 = vmatprep.subr.mxu0 0.0
        %590 = vmatpush1.msra.mxu0 0.0
        %591 = vmatprep.subr.mxu0 0.0
        %592 = vmatpush1.msra.mxu0 0.0
        %593 = vmatprep.subr.mxu0 0.0
        %594 = vmatpush1.msra.mxu0 0.0
        %595 = vmatprep.subr.mxu0 %v381
        %596 = vmatpush1.msra.mxu0 %v379
        %597 = vmatprep.subr.mxu0 0.0
        %598 = vmatpush2.msra.mxu0 0.0
        %599 = vmatprep.subr.mxu0 0.0
        %600 = vmatpush2.msra.mxu0 0.0
        %601 = vmatprep.subr.mxu0 0.0
        %602 = vmatpush2.msra.mxu0 0.0
        %603 = vmatprep.subr.mxu0 0.0
        %604 = vmatpush2.msra.mxu0 0.0
        %605 = vmatprep.subr.mxu0 0.0
        %606 = vmatpush2.msra.mxu0 0.0
        %607 = vmatprep.subr.mxu0 0.0
        %608 = vmatpush2.msra.mxu0 0.0
        %609 = vmatprep.subr.mxu0 0.0
        %610 = vmatpush2.msra.mxu0 0.0
        %611 = vmatprep.subr.mxu0 0.0
        %612 = vmatpush2.msra.mxu0 0.0
        %613 = vmatprep.subr.mxu0 0.0
        %614 = vmatpush2.msra.mxu0 0.0
        %615 = vmatprep.subr.mxu0 0.0
        %616 = vmatpush2.msra.mxu0 0.0
        %617 = vmatprep.subr.mxu0 0.0
        %618 = vmatpush2.msra.mxu0 0.0
        %619 = vmatprep.subr.mxu0 0.0
        %620 = vmatpush2.msra.mxu0 0.0
        %621 = vmatprep.subr.mxu0 0.0
        %622 = vmatpush2.msra.mxu0 0.0
        %623 = vmatprep.subr.mxu0 0.0
        %624 = vmatpush2.msra.mxu0 0.0
        %625 = vmatprep.subr.mxu0 0.0
        %626 = vmatpush2.msra.mxu0 0.0
        %627 = vmatprep.subr.mxu0 0.0
        %628 = vmatpush2.msra.mxu0 0.0
        %629 = vmatprep.mubr.f32.mxu0 0.0
        %630 = vmatmul.mubr.f32.gmra.mxu0 %v359
        %v631 = vpop.f32.mrf.mxu0
        %v632 = vadd.f32 0.0, %v631
        %v633 = vpop.f32.mrf.mxu0
        %v634 = vadd.f32 0.0, %v633
        %635 = vmatprep.mubr.f32.mxu0 0.0
        %636 = vmatmul.mubr.f32.gmra.mxu0 %v362
        %v637 = vpop.f32.mrf.mxu0
        %v638 = vadd.f32 0.0, %v637
        %v639 = vpop.f32.mrf.mxu0
        %v640 = vadd.f32 0.0, %v639
        %641 = vmatprep.mubr.f32.mxu0 0.0
        %642 = vmatmul.mubr.f32.gmra.mxu0 %v365
        %v643 = vpop.f32.mrf.mxu0
        %v644 = vadd.f32 0.0, %v643
        %v645 = vpop.f32.mrf.mxu0
        %v646 = vadd.f32 0.0, %v645
        %647 = vmatprep.mubr.f32.mxu0 0.0
        %648 = vmatmul.mubr.f32.gmra.mxu0 %v368
        %v649 = vpop.f32.mrf.mxu0
        %v650 = vadd.f32 0.0, %v649
        %v651 = vpop.f32.mrf.mxu0
        %v652 = vadd.f32 0.0, %v651
        %653 = vdwg.mxu0
        %654 = vmatprep.subr.mxu0 0.0
        %655 = vmatpush1.msra.mxu0 0.0
        %656 = vmatprep.subr.mxu0 0.0
        %657 = vmatpush1.msra.mxu0 0.0
        %658 = vmatprep.subr.mxu0 0.0
        %659 = vmatpush1.msra.mxu0 0.0
        %660 = vmatprep.subr.mxu0 0.0
        %661 = vmatpush1.msra.mxu0 0.0
        %662 = vmatprep.subr.mxu0 0.0
        %663 = vmatpush1.msra.mxu0 0.0
        %664 = vmatprep.subr.mxu0 0.0
        %665 = vmatpush1.msra.mxu0 0.0
        %666 = vmatprep.subr.mxu0 0.0
        %667 = vmatpush1.msra.mxu0 0.0
        %668 = vmatprep.subr.mxu0 0.0
        %669 = vmatpush1.msra.mxu0 0.0
        %670 = vmatprep.subr.mxu0 0.0
        %671 = vmatpush1.msra.mxu0 0.0
        %672 = vmatprep.subr.mxu0 0.0
        %673 = vmatpush1.msra.mxu0 0.0
        %674 = vmatprep.subr.mxu0 0.0
        %675 = vmatpush1.msra.mxu0 0.0
        %676 = vmatprep.subr.mxu0 0.0
        %677 = vmatpush1.msra.mxu0 0.0
        %678 = vmatprep.subr.mxu0 0.0
        %679 = vmatpush1.msra.mxu0 0.0
        %680 = vmatprep.subr.mxu0 0.0
        %681 = vmatpush1.msra.mxu0 0.0
        %682 = vmatprep.subr.mxu0 0.0
        %683 = vmatpush1.msra.mxu0 0.0
        %684 = vmatprep.subr.mxu0 %v385
        %685 = vmatpush1.msra.mxu0 %v383
        %686 = vmatprep.subr.mxu0 0.0
        %687 = vmatpush2.msra.mxu0 0.0
        %688 = vmatprep.subr.mxu0 0.0
        %689 = vmatpush2.msra.mxu0 0.0
        %690 = vmatprep.subr.mxu0 0.0
        %691 = vmatpush2.msra.mxu0 0.0
        %692 = vmatprep.subr.mxu0 0.0
        %693 = vmatpush2.msra.mxu0 0.0
        %694 = vmatprep.subr.mxu0 0.0
        %695 = vmatpush2.msra.mxu0 0.0
        %696 = vmatprep.subr.mxu0 0.0
        %697 = vmatpush2.msra.mxu0 0.0
        %698 = vmatprep.subr.mxu0 0.0
        %699 = vmatpush2.msra.mxu0 0.0
        %700 = vmatprep.subr.mxu0 0.0
        %701 = vmatpush2.msra.mxu0 0.0
        %702 = vmatprep.subr.mxu0 0.0
        %703 = vmatpush2.msra.mxu0 0.0
        %704 = vmatprep.subr.mxu0 0.0
        %705 = vmatpush2.msra.mxu0 0.0
        %706 = vmatprep.subr.mxu0 0.0
        %707 = vmatpush2.msra.mxu0 0.0
        %708 = vmatprep.subr.mxu0 0.0
        %709 = vmatpush2.msra.mxu0 0.0
        %710 = vmatprep.subr.mxu0 0.0
        %711 = vmatpush2.msra.mxu0 0.0
        %712 = vmatprep.subr.mxu0 0.0
        %713 = vmatpush2.msra.mxu0 0.0
        %714 = vmatprep.subr.mxu0 0.0
        %715 = vmatpush2.msra.mxu0 0.0
        %716 = vmatprep.subr.mxu0 0.0
        %717 = vmatpush2.msra.mxu0 0.0
        %718 = vmatprep.mubr.f32.mxu0 0.0
        %719 = vmatmul.mubr.f32.gmra.mxu0 %v359
        %v720 = vpop.f32.mrf.mxu0
        %v721 = vadd.f32 0.0, %v720
        %v722 = vpop.f32.mrf.mxu0
        %v723 = vadd.f32 0.0, %v722
        %724 = vmatprep.mubr.f32.mxu0 0.0
        %725 = vmatmul.mubr.f32.gmra.mxu0 %v362
        %v726 = vpop.f32.mrf.mxu0
        %v727 = vadd.f32 0.0, %v726
        %v728 = vpop.f32.mrf.mxu0
        %v729 = vadd.f32 0.0, %v728
        %730 = vmatprep.mubr.f32.mxu0 0.0
        %731 = vmatmul.mubr.f32.gmra.mxu0 %v365
        %v732 = vpop.f32.mrf.mxu0
        %v733 = vadd.f32 0.0, %v732
        %v734 = vpop.f32.mrf.mxu0
        %v735 = vadd.f32 0.0, %v734
        %736 = vmatprep.mubr.f32.mxu0 0.0
        %737 = vmatmul.mubr.f32.gmra.mxu0 %v368
        %v738 = vpop.f32.mrf.mxu0
        %v739 = vadd.f32 0.0, %v738
        %v740 = vpop.f32.mrf.mxu0
        %v741 = vadd.f32 0.0, %v740
        %742 = vdwg.mxu0
        %v743 = vmax.f32 %v454, 0.0
        %v744 = vmax.f32 %v456, 0.0
        %v745 = vmax.f32 %v543, 0.0
        %v746 = vmax.f32 %v545, 0.0
        %v747 = vmax.f32 %v632, 0.0
        %v748 = vmax.f32 %v634, 0.0
        %v749 = vmax.f32 %v721, 0.0
        %v750 = vmax.f32 %v723, 0.0
        %v751 = vmax.f32 %v460, 0.0
        %v752 = vmax.f32 %v462, 0.0
        %v753 = vmax.f32 %v549, 0.0
        %v754 = vmax.f32 %v551, 0.0
        %v755 = vmax.f32 %v638, 0.0
        %v756 = vmax.f32 %v640, 0.0
        %v757 = vmax.f32 %v727, 0.0
        %v758 = vmax.f32 %v729, 0.0
        %v759 = vmax.f32 %v466, 0.0
        %v760 = vmax.f32 %v468, 0.0
        %v761 = vmax.f32 %v555, 0.0
        %v762 = vmax.f32 %v557, 0.0
        %v763 = vmax.f32 %v644, 0.0
        %v764 = vmax.f32 %v646, 0.0
        %v765 = vmax.f32 %v733, 0.0
        %v766 = vmax.f32 %v735, 0.0
        %v767 = vmax.f32 %v472, 0.0
        %v768 = vmax.f32 %v474, 0.0
        %v769 = vmax.f32 %v561, 0.0
        %v770 = vmax.f32 %v563, 0.0
        %v771 = vmax.f32 %v650, 0.0
        %v772 = vmax.f32 %v652, 0.0
        %v773 = vmax.f32 %v739, 0.0
        %v774 = vmax.f32 %v741, 0.0
        %v775 = vld [vmem:[%s2] sm:$0xff]
        %v776 = vld [vmem:[%s2 + $0x8] sm:$0xff]
        %v777 = vld [vmem:[%s2 + $0x10] sm:$0xff]
        %v778 = vld [vmem:[%s2 + $0x18] sm:$0xff]
        %vm779 = vcmask 261120
        %v781 = vsel %vm779, %v775, 0
        %v784 = vsel %vm779, %v776, 0
        %v787 = vsel %vm779, %v777, 0
        %v790 = vsel %vm779, %v778, 0
        %792 = vmatprep.subr.mxu0 0.0
        %793 = vmatpush1.msra.mxu0 0.0
        %794 = vmatprep.subr.mxu0 0.0
        %795 = vmatpush1.msra.mxu0 0.0
        %796 = vmatprep.subr.mxu0 0.0
        %797 = vmatpush1.msra.mxu0 0.0
        %798 = vmatprep.subr.mxu0 0.0
        %799 = vmatpush1.msra.mxu0 0.0
        %800 = vmatprep.subr.mxu0 0.0
        %801 = vmatpush1.msra.mxu0 0.0
        %802 = vmatprep.subr.mxu0 0.0
        %803 = vmatpush1.msra.mxu0 0.0
        %804 = vmatprep.subr.mxu0 0.0
        %805 = vmatpush1.msra.mxu0 0.0
        %806 = vmatprep.subr.mxu0 0.0
        %807 = vmatpush1.msra.mxu0 0.0
        %808 = vmatprep.subr.mxu0 0.0
        %809 = vmatpush1.msra.mxu0 0.0
        %810 = vmatprep.subr.mxu0 0.0
        %811 = vmatpush1.msra.mxu0 0.0
        %812 = vmatprep.subr.mxu0 0.0
        %813 = vmatpush1.msra.mxu0 0.0
        %814 = vmatprep.subr.mxu0 0.0
        %815 = vmatpush1.msra.mxu0 0.0
        %816 = vmatprep.subr.mxu0 %v768
        %817 = vmatpush1.msra.mxu0 %v767
        %818 = vmatprep.subr.mxu0 %v760
        %819 = vmatpush1.msra.mxu0 %v759
        %820 = vmatprep.subr.mxu0 %v752
        %821 = vmatpush1.msra.mxu0 %v751
        %822 = vmatprep.subr.mxu0 %v744
        %823 = vmatpush1.msra.mxu0 %v743
        %824 = vmatprep.subr.mxu0 0.0
        %825 = vmatpush2.msra.mxu0 0.0
        %826 = vmatprep.subr.mxu0 0.0
        %827 = vmatpush2.msra.mxu0 0.0
        %828 = vmatprep.subr.mxu0 0.0
        %829 = vmatpush2.msra.mxu0 0.0
        %830 = vmatprep.subr.mxu0 0.0
        %831 = vmatpush2.msra.mxu0 0.0
        %832 = vmatprep.subr.mxu0 0.0
        %833 = vmatpush2.msra.mxu0 0.0
        %834 = vmatprep.subr.mxu0 0.0
        %835 = vmatpush2.msra.mxu0 0.0
        %836 = vmatprep.subr.mxu0 0.0
        %837 = vmatpush2.msra.mxu0 0.0
        %838 = vmatprep.subr.mxu0 0.0
        %839 = vmatpush2.msra.mxu0 0.0
        %840 = vmatprep.subr.mxu0 0.0
        %841 = vmatpush2.msra.mxu0 0.0
        %842 = vmatprep.subr.mxu0 0.0
        %843 = vmatpush2.msra.mxu0 0.0
        %844 = vmatprep.subr.mxu0 0.0
        %845 = vmatpush2.msra.mxu0 0.0
        %846 = vmatprep.subr.mxu0 0.0
        %847 = vmatpush2.msra.mxu0 0.0
        %848 = vmatprep.subr.mxu0 0.0
        %849 = vmatpush2.msra.mxu0 0.0
        %850 = vmatprep.subr.mxu0 0.0
        %851 = vmatpush2.msra.mxu0 0.0
        %852 = vmatprep.subr.mxu0 0.0
        %853 = vmatpush2.msra.mxu0 0.0
        %854 = vmatprep.subr.mxu0 0.0
        %855 = vmatpush2.msra.mxu0 0.0
        %856 = vmatprep.mubr.f32.mxu0 0.0
        %857 = vmatmul.mubr.f32.gmra.mxu0 %v781
        %v858 = vpop.f32.mrf.mxu0
        %v859 = vadd.f32 0.0, %v858
        %v860 = vpop.f32.mrf.mxu0
        %v861 = vadd.f32 0.0, %v860
        %862 = vmatprep.mubr.f32.mxu0 0.0
        %863 = vmatmul.mubr.f32.gmra.mxu0 %v784
        %v864 = vpop.f32.mrf.mxu0
        %v865 = vadd.f32 0.0, %v864
        %v866 = vpop.f32.mrf.mxu0
        %v867 = vadd.f32 0.0, %v866
        %868 = vmatprep.mubr.f32.mxu0 0.0
        %869 = vmatmul.mubr.f32.gmra.mxu0 %v787
        %v870 = vpop.f32.mrf.mxu0
        %v871 = vadd.f32 0.0, %v870
        %v872 = vpop.f32.mrf.mxu0
        %v873 = vadd.f32 0.0, %v872
        %874 = vmatprep.mubr.f32.mxu0 0.0
        %875 = vmatmul.mubr.f32.gmra.mxu0 %v790
        %v876 = vpop.f32.mrf.mxu0
        %v877 = vadd.f32 0.0, %v876
        %v878 = vpop.f32.mrf.mxu0
        %v879 = vadd.f32 0.0, %v878
        %880 = vdwg.mxu0
        %881 = vmatprep.subr.mxu0 0.0
        %882 = vmatpush1.msra.mxu0 0.0
        %883 = vmatprep.subr.mxu0 0.0
        %884 = vmatpush1.msra.mxu0 0.0
        %885 = vmatprep.subr.mxu0 0.0
        %886 = vmatpush1.msra.mxu0 0.0
        %887 = vmatprep.subr.mxu0 0.0
        %888 = vmatpush1.msra.mxu0 0.0
        %889 = vmatprep.subr.mxu0 0.0
        %890 = vmatpush1.msra.mxu0 0.0
        %891 = vmatprep.subr.mxu0 0.0
        %892 = vmatpush1.msra.mxu0 0.0
        %893 = vmatprep.subr.mxu0 0.0
        %894 = vmatpush1.msra.mxu0 0.0
        %895 = vmatprep.subr.mxu0 0.0
        %896 = vmatpush1.msra.mxu0 0.0
        %897 = vmatprep.subr.mxu0 0.0
        %898 = vmatpush1.msra.mxu0 0.0
        %899 = vmatprep.subr.mxu0 0.0
        %900 = vmatpush1.msra.mxu0 0.0
        %901 = vmatprep.subr.mxu0 0.0
        %902 = vmatpush1.msra.mxu0 0.0
        %903 = vmatprep.subr.mxu0 0.0
        %904 = vmatpush1.msra.mxu0 0.0
        %905 = vmatprep.subr.mxu0 %v770
        %906 = vmatpush1.msra.mxu0 %v769
        %907 = vmatprep.subr.mxu0 %v762
        %908 = vmatpush1.msra.mxu0 %v761
        %909 = vmatprep.subr.mxu0 %v754
        %910 = vmatpush1.msra.mxu0 %v753
        %911 = vmatprep.subr.mxu0 %v746
        %912 = vmatpush1.msra.mxu0 %v745
        %913 = vmatprep.subr.mxu0 0.0
        %914 = vmatpush2.msra.mxu0 0.0
        %915 = vmatprep.subr.mxu0 0.0
        %916 = vmatpush2.msra.mxu0 0.0
        %917 = vmatprep.subr.mxu0 0.0
        %918 = vmatpush2.msra.mxu0 0.0
        %919 = vmatprep.subr.mxu0 0.0
        %920 = vmatpush2.msra.mxu0 0.0
        %921 = vmatprep.subr.mxu0 0.0
        %922 = vmatpush2.msra.mxu0 0.0
        %923 = vmatprep.subr.mxu0 0.0
        %924 = vmatpush2.msra.mxu0 0.0
        %925 = vmatprep.subr.mxu0 0.0
        %926 = vmatpush2.msra.mxu0 0.0
        %927 = vmatprep.subr.mxu0 0.0
        %928 = vmatpush2.msra.mxu0 0.0
        %929 = vmatprep.subr.mxu0 0.0
        %930 = vmatpush2.msra.mxu0 0.0
        %931 = vmatprep.subr.mxu0 0.0
        %932 = vmatpush2.msra.mxu0 0.0
        %933 = vmatprep.subr.mxu0 0.0
        %934 = vmatpush2.msra.mxu0 0.0
        %935 = vmatprep.subr.mxu0 0.0
        %936 = vmatpush2.msra.mxu0 0.0
        %937 = vmatprep.subr.mxu0 0.0
        %938 = vmatpush2.msra.mxu0 0.0
        %939 = vmatprep.subr.mxu0 0.0
        %940 = vmatpush2.msra.mxu0 0.0
        %941 = vmatprep.subr.mxu0 0.0
        %942 = vmatpush2.msra.mxu0 0.0
        %943 = vmatprep.subr.mxu0 0.0
        %944 = vmatpush2.msra.mxu0 0.0
        %945 = vmatprep.mubr.f32.mxu0 0.0
        %946 = vmatmul.mubr.f32.gmra.mxu0 %v781
        %v947 = vpop.f32.mrf.mxu0
        %v948 = vadd.f32 0.0, %v947
        %v949 = vpop.f32.mrf.mxu0
        %v950 = vadd.f32 0.0, %v949
        %951 = vmatprep.mubr.f32.mxu0 0.0
        %952 = vmatmul.mubr.f32.gmra.mxu0 %v784
        %v953 = vpop.f32.mrf.mxu0
        %v954 = vadd.f32 0.0, %v953
        %v955 = vpop.f32.mrf.mxu0
        %v956 = vadd.f32 0.0, %v955
        %957 = vmatprep.mubr.f32.mxu0 0.0
        %958 = vmatmul.mubr.f32.gmra.mxu0 %v787
        %v959 = vpop.f32.mrf.mxu0
        %v960 = vadd.f32 0.0, %v959
        %v961 = vpop.f32.mrf.mxu0
        %v962 = vadd.f32 0.0, %v961
        %963 = vmatprep.mubr.f32.mxu0 0.0
        %964 = vmatmul.mubr.f32.gmra.mxu0 %v790
        %v965 = vpop.f32.mrf.mxu0
        %v966 = vadd.f32 0.0, %v965
        %v967 = vpop.f32.mrf.mxu0
        %v968 = vadd.f32 0.0, %v967
        %969 = vdwg.mxu0
        %970 = vmatprep.subr.mxu0 0.0
        %971 = vmatpush1.msra.mxu0 0.0
        %972 = vmatprep.subr.mxu0 0.0
        %973 = vmatpush1.msra.mxu0 0.0
        %974 = vmatprep.subr.mxu0 0.0
        %975 = vmatpush1.msra.mxu0 0.0
        %976 = vmatprep.subr.mxu0 0.0
        %977 = vmatpush1.msra.mxu0 0.0
        %978 = vmatprep.subr.mxu0 0.0
        %979 = vmatpush1.msra.mxu0 0.0
        %980 = vmatprep.subr.mxu0 0.0
        %981 = vmatpush1.msra.mxu0 0.0
        %982 = vmatprep.subr.mxu0 0.0
        %983 = vmatpush1.msra.mxu0 0.0
        %984 = vmatprep.subr.mxu0 0.0
        %985 = vmatpush1.msra.mxu0 0.0
        %986 = vmatprep.subr.mxu0 0.0
        %987 = vmatpush1.msra.mxu0 0.0
        %988 = vmatprep.subr.mxu0 0.0
        %989 = vmatpush1.msra.mxu0 0.0
        %990 = vmatprep.subr.mxu0 0.0
        %991 = vmatpush1.msra.mxu0 0.0
        %992 = vmatprep.subr.mxu0 0.0
        %993 = vmatpush1.msra.mxu0 0.0
        %994 = vmatprep.subr.mxu0 %v772
        %995 = vmatpush1.msra.mxu0 %v771
        %996 = vmatprep.subr.mxu0 %v764
        %997 = vmatpush1.msra.mxu0 %v763
        %998 = vmatprep.subr.mxu0 %v756
        %999 = vmatpush1.msra.mxu0 %v755
        %1000 = vmatprep.subr.mxu0 %v748
        %1001 = vmatpush1.msra.mxu0 %v747
        %1002 = vmatprep.subr.mxu0 0.0
        %1003 = vmatpush2.msra.mxu0 0.0
        %1004 = vmatprep.subr.mxu0 0.0
        %1005 = vmatpush2.msra.mxu0 0.0
        %1006 = vmatprep.subr.mxu0 0.0
        %1007 = vmatpush2.msra.mxu0 0.0
        %1008 = vmatprep.subr.mxu0 0.0
        %1009 = vmatpush2.msra.mxu0 0.0
        %1010 = vmatprep.subr.mxu0 0.0
        %1011 = vmatpush2.msra.mxu0 0.0
        %1012 = vmatprep.subr.mxu0 0.0
        %1013 = vmatpush2.msra.mxu0 0.0
        %1014 = vmatprep.subr.mxu0 0.0
        %1015 = vmatpush2.msra.mxu0 0.0
        %1016 = vmatprep.subr.mxu0 0.0
        %1017 = vmatpush2.msra.mxu0 0.0
        %1018 = vmatprep.subr.mxu0 0.0
        %1019 = vmatpush2.msra.mxu0 0.0
        %1020 = vmatprep.subr.mxu0 0.0
        %1021 = vmatpush2.msra.mxu0 0.0
        %1022 = vmatprep.subr.mxu0 0.0
        %1023 = vmatpush2.msra.mxu0 0.0
        %1024 = vmatprep.subr.mxu0 0.0
        %1025 = vmatpush2.msra.mxu0 0.0
        %1026 = vmatprep.subr.mxu0 0.0
        %1027 = vmatpush2.msra.mxu0 0.0
        %1028 = vmatprep.subr.mxu0 0.0
        %1029 = vmatpush2.msra.mxu0 0.0
        %1030 = vmatprep.subr.mxu0 0.0
        %1031 = vmatpush2.msra.mxu0 0.0
        %1032 = vmatprep.subr.mxu0 0.0
        %1033 = vmatpush2.msra.mxu0 0.0
        %1034 = vmatprep.mubr.f32.mxu0 0.0
        %1035 = vmatmul.mubr.f32.gmra.mxu0 %v781
        %v1036 = vpop.f32.mrf.mxu0
        %v1037 = vadd.f32 0.0, %v1036
        %v1038 = vpop.f32.mrf.mxu0
        %v1039 = vadd.f32 0.0, %v1038
        %1040 = vmatprep.mubr.f32.mxu0 0.0
        %1041 = vmatmul.mubr.f32.gmra.mxu0 %v784
        %v1042 = vpop.f32.mrf.mxu0
        %v1043 = vadd.f32 0.0, %v1042
        %v1044 = vpop.f32.mrf.mxu0
        %v1045 = vadd.f32 0.0, %v1044
        %1046 = vmatprep.mubr.f32.mxu0 0.0
        %1047 = vmatmul.mubr.f32.gmra.mxu0 %v787
        %v1048 = vpop.f32.mrf.mxu0
        %v1049 = vadd.f32 0.0, %v1048
        %v1050 = vpop.f32.mrf.mxu0
        %v1051 = vadd.f32 0.0, %v1050
        %1052 = vmatprep.mubr.f32.mxu0 0.0
        %1053 = vmatmul.mubr.f32.gmra.mxu0 %v790
        %v1054 = vpop.f32.mrf.mxu0
        %v1055 = vadd.f32 0.0, %v1054
        %v1056 = vpop.f32.mrf.mxu0
        %v1057 = vadd.f32 0.0, %v1056
        %1058 = vdwg.mxu0
        %1059 = vmatprep.subr.mxu0 0.0
        %1060 = vmatpush1.msra.mxu0 0.0
        %1061 = vmatprep.subr.mxu0 0.0
        %1062 = vmatpush1.msra.mxu0 0.0
        %1063 = vmatprep.subr.mxu0 0.0
        %1064 = vmatpush1.msra.mxu0 0.0
        %1065 = vmatprep.subr.mxu0 0.0
        %1066 = vmatpush1.msra.mxu0 0.0
        %1067 = vmatprep.subr.mxu0 0.0
        %1068 = vmatpush1.msra.mxu0 0.0
        %1069 = vmatprep.subr.mxu0 0.0
        %1070 = vmatpush1.msra.mxu0 0.0
        %1071 = vmatprep.subr.mxu0 0.0
        %1072 = vmatpush1.msra.mxu0 0.0
        %1073 = vmatprep.subr.mxu0 0.0
        %1074 = vmatpush1.msra.mxu0 0.0
        %1075 = vmatprep.subr.mxu0 0.0
        %1076 = vmatpush1.msra.mxu0 0.0
        %1077 = vmatprep.subr.mxu0 0.0
        %1078 = vmatpush1.msra.mxu0 0.0
        %1079 = vmatprep.subr.mxu0 0.0
        %1080 = vmatpush1.msra.mxu0 0.0
        %1081 = vmatprep.subr.mxu0 0.0
        %1082 = vmatpush1.msra.mxu0 0.0
        %1083 = vmatprep.subr.mxu0 %v774
        %1084 = vmatpush1.msra.mxu0 %v773
        %1085 = vmatprep.subr.mxu0 %v766
        %1086 = vmatpush1.msra.mxu0 %v765
        %1087 = vmatprep.subr.mxu0 %v758
        %1088 = vmatpush1.msra.mxu0 %v757
        %1089 = vmatprep.subr.mxu0 %v750
        %1090 = vmatpush1.msra.mxu0 %v749
        %1091 = vmatprep.subr.mxu0 0.0
        %1092 = vmatpush2.msra.mxu0 0.0
        %1093 = vmatprep.subr.mxu0 0.0
        %1094 = vmatpush2.msra.mxu0 0.0
        %1095 = vmatprep.subr.mxu0 0.0
        %1096 = vmatpush2.msra.mxu0 0.0
        %1097 = vmatprep.subr.mxu0 0.0
        %1098 = vmatpush2.msra.mxu0 0.0
        %1099 = vmatprep.subr.mxu0 0.0
        %1100 = vmatpush2.msra.mxu0 0.0
        %1101 = vmatprep.subr.mxu0 0.0
        %1102 = vmatpush2.msra.mxu0 0.0
        %1103 = vmatprep.subr.mxu0 0.0
        %1104 = vmatpush2.msra.mxu0 0.0
        %1105 = vmatprep.subr.mxu0 0.0
        %1106 = vmatpush2.msra.mxu0 0.0
        %1107 = vmatprep.subr.mxu0 0.0
        %1108 = vmatpush2.msra.mxu0 0.0
        %1109 = vmatprep.subr.mxu0 0.0
        %1110 = vmatpush2.msra.mxu0 0.0
        %1111 = vmatprep.subr.mxu0 0.0
        %1112 = vmatpush2.msra.mxu0 0.0
        %1113 = vmatprep.subr.mxu0 0.0
        %1114 = vmatpush2.msra.mxu0 0.0
        %1115 = vmatprep.subr.mxu0 0.0
        %1116 = vmatpush2.msra.mxu0 0.0
        %1117 = vmatprep.subr.mxu0 0.0
        %1118 = vmatpush2.msra.mxu0 0.0
        %1119 = vmatprep.subr.mxu0 0.0
        %1120 = vmatpush2.msra.mxu0 0.0
        %1121 = vmatprep.subr.mxu0 0.0
        %1122 = vmatpush2.msra.mxu0 0.0
        %1123 = vmatprep.mubr.f32.mxu0 0.0
        %1124 = vmatmul.mubr.f32.gmra.mxu0 %v781
        %v1125 = vpop.f32.mrf.mxu0
        %v1126 = vadd.f32 0.0, %v1125
        %v1127 = vpop.f32.mrf.mxu0
        %v1128 = vadd.f32 0.0, %v1127
        %1129 = vmatprep.mubr.f32.mxu0 0.0
        %1130 = vmatmul.mubr.f32.gmra.mxu0 %v784
        %v1131 = vpop.f32.mrf.mxu0
        %v1132 = vadd.f32 0.0, %v1131
        %v1133 = vpop.f32.mrf.mxu0
        %v1134 = vadd.f32 0.0, %v1133
        %1135 = vmatprep.mubr.f32.mxu0 0.0
        %1136 = vmatmul.mubr.f32.gmra.mxu0 %v787
        %v1137 = vpop.f32.mrf.mxu0
        %v1138 = vadd.f32 0.0, %v1137
        %v1139 = vpop.f32.mrf.mxu0
        %v1140 = vadd.f32 0.0, %v1139
        %1141 = vmatprep.mubr.f32.mxu0 0.0
        %1142 = vmatmul.mubr.f32.gmra.mxu0 %v790
        %v1143 = vpop.f32.mrf.mxu0
        %v1144 = vadd.f32 0.0, %v1143
        %v1145 = vpop.f32.mrf.mxu0
        %v1146 = vadd.f32 0.0, %v1145
        %1147 = vdwg.mxu0
        %v1148 = vadd.f32 %v743, %v859
        %v1149 = vadd.f32 %v744, %v861
        %v1150 = vadd.f32 %v745, %v948
        %v1151 = vadd.f32 %v746, %v950
        %v1152 = vadd.f32 %v747, %v1037
        %v1153 = vadd.f32 %v748, %v1039
        %v1154 = vadd.f32 %v749, %v1126
        %v1155 = vadd.f32 %v750, %v1128
        %v1156 = vadd.f32 %v751, %v865
        %v1157 = vadd.f32 %v752, %v867
        %v1158 = vadd.f32 %v753, %v954
        %v1159 = vadd.f32 %v754, %v956
        %v1160 = vadd.f32 %v755, %v1043
        %v1161 = vadd.f32 %v756, %v1045
        %v1162 = vadd.f32 %v757, %v1132
        %v1163 = vadd.f32 %v758, %v1134
        %v1164 = vadd.f32 %v759, %v871
        %v1165 = vadd.f32 %v760, %v873
        %v1166 = vadd.f32 %v761, %v960
        %v1167 = vadd.f32 %v762, %v962
        %v1168 = vadd.f32 %v763, %v1049
        %v1169 = vadd.f32 %v764, %v1051
        %v1170 = vadd.f32 %v765, %v1138
        %v1171 = vadd.f32 %v766, %v1140
        %v1172 = vadd.f32 %v767, %v877
        %v1173 = vadd.f32 %v768, %v879
        %v1174 = vadd.f32 %v769, %v966
        %v1175 = vadd.f32 %v770, %v968
        %v1176 = vadd.f32 %v771, %v1055
        %v1177 = vadd.f32 %v772, %v1057
        %v1178 = vadd.f32 %v773, %v1144
        %v1179 = vadd.f32 %v774, %v1146
        %v1180 = vld [vmem:[%s3] sm:$0xff]
        %v1181 = vld [vmem:[%s3 + $0x8] sm:$0xff]
        %v1182 = vld [vmem:[%s3 + $0x10] sm:$0xff]
        %v1183 = vld [vmem:[%s3 + $0x18] sm:$0xff]
        %1185 = vset.pattern.permute.xlu0 0
        %1186 = vperm.xlu0 %1185, %v1180
        %v1187 = vpop.permute.xlu0 %1186
        %1190 = vset.pattern.permute.xlu0 0
        %1191 = vperm.xlu0 %1190, %v1181
        %v1192 = vpop.permute.xlu0 %1191
        %1195 = vset.pattern.permute.xlu0 0
        %1196 = vperm.xlu0 %1195, %v1182
        %v1197 = vpop.permute.xlu0 %1196
        %1200 = vset.pattern.permute.xlu0 0
        %1201 = vperm.xlu0 %1200, %v1183
        %v1202 = vpop.permute.xlu0 %1201
        %v1204 = vadd.f32 %v1148, %v1187
        %v1205 = vadd.f32 %v1149, %v1187
        %v1206 = vadd.f32 %v1150, %v1187
        %v1207 = vadd.f32 %v1151, %v1187
        %v1208 = vadd.f32 %v1152, %v1187
        %v1209 = vadd.f32 %v1153, %v1187
        %v1210 = vadd.f32 %v1154, %v1187
        %v1211 = vadd.f32 %v1155, %v1187
        %v1212 = vadd.f32 %v1156, %v1192
        %v1213 = vadd.f32 %v1157, %v1192
        %v1214 = vadd.f32 %v1158, %v1192
        %v1215 = vadd.f32 %v1159, %v1192
        %v1216 = vadd.f32 %v1160, %v1192
        %v1217 = vadd.f32 %v1161, %v1192
        %v1218 = vadd.f32 %v1162, %v1192
        %v1219 = vadd.f32 %v1163, %v1192
        %v1220 = vadd.f32 %v1164, %v1197
        %v1221 = vadd.f32 %v1165, %v1197
        %v1222 = vadd.f32 %v1166, %v1197
        %v1223 = vadd.f32 %v1167, %v1197
        %v1224 = vadd.f32 %v1168, %v1197
        %v1225 = vadd.f32 %v1169, %v1197
        %v1226 = vadd.f32 %v1170, %v1197
        %v1227 = vadd.f32 %v1171, %v1197
        %v1228 = vadd.f32 %v1172, %v1202
        %v1229 = vadd.f32 %v1173, %v1202
        %v1230 = vadd.f32 %v1174, %v1202
        %v1231 = vadd.f32 %v1175, %v1202
        %v1232 = vadd.f32 %v1176, %v1202
        %v1233 = vadd.f32 %v1177, %v1202
        %v1234 = vadd.f32 %v1178, %v1202
        %v1235 = vadd.f32 %v1179, %v1202
        %v1236 = vmax.f32 %v1204, 0.0
        %v1237 = vmax.f32 %v1205, 0.0
        %v1238 = vmax.f32 %v1206, 0.0
        %v1239 = vmax.f32 %v1207, 0.0
        %v1240 = vmax.f32 %v1208, 0.0
        %v1241 = vmax.f32 %v1209, 0.0
        %v1242 = vmax.f32 %v1210, 0.0
        %v1243 = vmax.f32 %v1211, 0.0
        %v1244 = vmax.f32 %v1212, 0.0
        %v1245 = vmax.f32 %v1213, 0.0
        %v1246 = vmax.f32 %v1214, 0.0
        %v1247 = vmax.f32 %v1215, 0.0
        %v1248 = vmax.f32 %v1216, 0.0
        %v1249 = vmax.f32 %v1217, 0.0
        %v1250 = vmax.f32 %v1218, 0.0
        %v1251 = vmax.f32 %v1219, 0.0
        %v1252 = vmax.f32 %v1220, 0.0
        %v1253 = vmax.f32 %v1221, 0.0
        %v1254 = vmax.f32 %v1222, 0.0
        %v1255 = vmax.f32 %v1223, 0.0
        %v1256 = vmax.f32 %v1224, 0.0
        %v1257 = vmax.f32 %v1225, 0.0
        %v1258 = vmax.f32 %v1226, 0.0
        %v1259 = vmax.f32 %v1227, 0.0
        %v1260 = vmax.f32 %v1228, 0.0
        %v1261 = vmax.f32 %v1229, 0.0
        %v1262 = vmax.f32 %v1230, 0.0
        %v1263 = vmax.f32 %v1231, 0.0
        %v1264 = vmax.f32 %v1232, 0.0
        %v1265 = vmax.f32 %v1233, 0.0
        %v1266 = vmax.f32 %v1234, 0.0
        %v1267 = vmax.f32 %v1235, 0.0
        %v1268 = vld [vmem:[%s4] sm:$0xff]
        %v1269 = vld [vmem:[%s4 + $0x8] sm:$0xff]
        %v1270 = vld [vmem:[%s4 + $0x10] sm:$0xff]
        %v1271 = vld [vmem:[%s4 + $0x18] sm:$0xff]
        %v1273 = vsel %vm779, %v1268, 0
        %v1276 = vsel %vm779, %v1269, 0
        %v1279 = vsel %vm779, %v1270, 0
        %v1282 = vsel %vm779, %v1271, 0
        %1284 = vmatprep.subr.mxu0 0.0
        %1285 = vmatpush1.msra.mxu0 0.0
        %1286 = vmatprep.subr.mxu0 0.0
        %1287 = vmatpush1.msra.mxu0 0.0
        %1288 = vmatprep.subr.mxu0 0.0
        %1289 = vmatpush1.msra.mxu0 0.0
        %1290 = vmatprep.subr.mxu0 0.0
        %1291 = vmatpush1.msra.mxu0 0.0
        %1292 = vmatprep.subr.mxu0 0.0
        %1293 = vmatpush1.msra.mxu0 0.0
        %1294 = vmatprep.subr.mxu0 0.0
        %1295 = vmatpush1.msra.mxu0 0.0
        %1296 = vmatprep.subr.mxu0 0.0
        %1297 = vmatpush1.msra.mxu0 0.0
        %1298 = vmatprep.subr.mxu0 0.0
        %1299 = vmatpush1.msra.mxu0 0.0
        %1300 = vmatprep.subr.mxu0 0.0
        %1301 = vmatpush1.msra.mxu0 0.0
        %1302 = vmatprep.subr.mxu0 0.0
        %1303 = vmatpush1.msra.mxu0 0.0
        %1304 = vmatprep.subr.mxu0 0.0
        %1305 = vmatpush1.msra.mxu0 0.0
        %1306 = vmatprep.subr.mxu0 0.0
        %1307 = vmatpush1.msra.mxu0 0.0
        %1308 = vmatprep.subr.mxu0 %v1261
        %1309 = vmatpush1.msra.mxu0 %v1260
        %1310 = vmatprep.subr.mxu0 %v1253
        %1311 = vmatpush1.msra.mxu0 %v1252
        %1312 = vmatprep.subr.mxu0 %v1245
        %1313 = vmatpush1.msra.mxu0 %v1244
        %1314 = vmatprep.subr.mxu0 %v1237
        %1315 = vmatpush1.msra.mxu0 %v1236
        %1316 = vmatprep.subr.mxu0 0.0
        %1317 = vmatpush2.msra.mxu0 0.0
        %1318 = vmatprep.subr.mxu0 0.0
        %1319 = vmatpush2.msra.mxu0 0.0
        %1320 = vmatprep.subr.mxu0 0.0
        %1321 = vmatpush2.msra.mxu0 0.0
        %1322 = vmatprep.subr.mxu0 0.0
        %1323 = vmatpush2.msra.mxu0 0.0
        %1324 = vmatprep.subr.mxu0 0.0
        %1325 = vmatpush2.msra.mxu0 0.0
        %1326 = vmatprep.subr.mxu0 0.0
        %1327 = vmatpush2.msra.mxu0 0.0
        %1328 = vmatprep.subr.mxu0 0.0
        %1329 = vmatpush2.msra.mxu0 0.0
        %1330 = vmatprep.subr.mxu0 0.0
        %1331 = vmatpush2.msra.mxu0 0.0
        %1332 = vmatprep.subr.mxu0 0.0
        %1333 = vmatpush2.msra.mxu0 0.0
        %1334 = vmatprep.subr.mxu0 0.0
        %1335 = vmatpush2.msra.mxu0 0.0
        %1336 = vmatprep.subr.mxu0 0.0
        %1337 = vmatpush2.msra.mxu0 0.0
        %1338 = vmatprep.subr.mxu0 0.0
        %1339 = vmatpush2.msra.mxu0 0.0
        %1340 = vmatprep.subr.mxu0 0.0
        %1341 = vmatpush2.msra.mxu0 0.0
        %1342 = vmatprep.subr.mxu0 0.0
        %1343 = vmatpush2.msra.mxu0 0.0
        %1344 = vmatprep.subr.mxu0 0.0
        %1345 = vmatpush2.msra.mxu0 0.0
        %1346 = vmatprep.subr.mxu0 0.0
        %1347 = vmatpush2.msra.mxu0 0.0
        %1348 = vmatprep.mubr.f32.mxu0 0.0
        %1349 = vmatmul.mubr.f32.gmra.mxu0 %v1273
        %v1350 = vpop.f32.mrf.mxu0
        %v1351 = vadd.f32 0.0, %v1350
        %v1352 = vpop.f32.mrf.mxu0
        %v1353 = vadd.f32 0.0, %v1352
        %1354 = vmatprep.mubr.f32.mxu0 0.0
        %1355 = vmatmul.mubr.f32.gmra.mxu0 %v1276
        %v1356 = vpop.f32.mrf.mxu0
        %v1357 = vadd.f32 0.0, %v1356
        %v1358 = vpop.f32.mrf.mxu0
        %v1359 = vadd.f32 0.0, %v1358
        %1360 = vmatprep.mubr.f32.mxu0 0.0
        %1361 = vmatmul.mubr.f32.gmra.mxu0 %v1279
        %v1362 = vpop.f32.mrf.mxu0
        %v1363 = vadd.f32 0.0, %v1362
        %v1364 = vpop.f32.mrf.mxu0
        %v1365 = vadd.f32 0.0, %v1364
        %1366 = vmatprep.mubr.f32.mxu0 0.0
        %1367 = vmatmul.mubr.f32.gmra.mxu0 %v1282
        %v1368 = vpop.f32.mrf.mxu0
        %v1369 = vadd.f32 0.0, %v1368
        %v1370 = vpop.f32.mrf.mxu0
        %v1371 = vadd.f32 0.0, %v1370
        %1372 = vdwg.mxu0
        %1373 = vmatprep.subr.mxu0 0.0
        %1374 = vmatpush1.msra.mxu0 0.0
        %1375 = vmatprep.subr.mxu0 0.0
        %1376 = vmatpush1.msra.mxu0 0.0
        %1377 = vmatprep.subr.mxu0 0.0
        %1378 = vmatpush1.msra.mxu0 0.0
        %1379 = vmatprep.subr.mxu0 0.0
        %1380 = vmatpush1.msra.mxu0 0.0
        %1381 = vmatprep.subr.mxu0 0.0
        %1382 = vmatpush1.msra.mxu0 0.0
        %1383 = vmatprep.subr.mxu0 0.0
        %1384 = vmatpush1.msra.mxu0 0.0
        %1385 = vmatprep.subr.mxu0 0.0
        %1386 = vmatpush1.msra.mxu0 0.0
        %1387 = vmatprep.subr.mxu0 0.0
        %1388 = vmatpush1.msra.mxu0 0.0
        %1389 = vmatprep.subr.mxu0 0.0
        %1390 = vmatpush1.msra.mxu0 0.0
        %1391 = vmatprep.subr.mxu0 0.0
        %1392 = vmatpush1.msra.mxu0 0.0
        %1393 = vmatprep.subr.mxu0 0.0
        %1394 = vmatpush1.msra.mxu0 0.0
        %1395 = vmatprep.subr.mxu0 0.0
        %1396 = vmatpush1.msra.mxu0 0.0
        %1397 = vmatprep.subr.mxu0 %v1263
        %1398 = vmatpush1.msra.mxu0 %v1262
        %1399 = vmatprep.subr.mxu0 %v1255
        %1400 = vmatpush1.msra.mxu0 %v1254
        %1401 = vmatprep.subr.mxu0 %v1247
        %1402 = vmatpush1.msra.mxu0 %v1246
        %1403 = vmatprep.subr.mxu0 %v1239
        %1404 = vmatpush1.msra.mxu0 %v1238
        %1405 = vmatprep.subr.mxu0 0.0
        %1406 = vmatpush2.msra.mxu0 0.0
        %1407 = vmatprep.subr.mxu0 0.0
        %1408 = vmatpush2.msra.mxu0 0.0
        %1409 = vmatprep.subr.mxu0 0.0
        %1410 = vmatpush2.msra.mxu0 0.0
        %1411 = vmatprep.subr.mxu0 0.0
        %1412 = vmatpush2.msra.mxu0 0.0
        %1413 = vmatprep.subr.mxu0 0.0
        %1414 = vmatpush2.msra.mxu0 0.0
        %1415 = vmatprep.subr.mxu0 0.0
        %1416 = vmatpush2.msra.mxu0 0.0
        %1417 = vmatprep.subr.mxu0 0.0
        %1418 = vmatpush2.msra.mxu0 0.0
        %1419 = vmatprep.subr.mxu0 0.0
        %1420 = vmatpush2.msra.mxu0 0.0
        %1421 = vmatprep.subr.mxu0 0.0
        %1422 = vmatpush2.msra.mxu0 0.0
        %1423 = vmatprep.subr.mxu0 0.0
        %1424 = vmatpush2.msra.mxu0 0.0
        %1425 = vmatprep.subr.mxu0 0.0
        %1426 = vmatpush2.msra.mxu0 0.0
        %1427 = vmatprep.subr.mxu0 0.0
        %1428 = vmatpush2.msra.mxu0 0.0
        %1429 = vmatprep.subr.mxu0 0.0
        %1430 = vmatpush2.msra.mxu0 0.0
        %1431 = vmatprep.subr.mxu0 0.0
        %1432 = vmatpush2.msra.mxu0 0.0
        %1433 = vmatprep.subr.mxu0 0.0
        %1434 = vmatpush2.msra.mxu0 0.0
        %1435 = vmatprep.subr.mxu0 0.0
        %1436 = vmatpush2.msra.mxu0 0.0
        %1437 = vmatprep.mubr.f32.mxu0 0.0
        %1438 = vmatmul.mubr.f32.gmra.mxu0 %v1273
        %v1439 = vpop.f32.mrf.mxu0
        %v1440 = vadd.f32 0.0, %v1439
        %v1441 = vpop.f32.mrf.mxu0
        %v1442 = vadd.f32 0.0, %v1441
        %1443 = vmatprep.mubr.f32.mxu0 0.0
        %1444 = vmatmul.mubr.f32.gmra.mxu0 %v1276
        %v1445 = vpop.f32.mrf.mxu0
        %v1446 = vadd.f32 0.0, %v1445
        %v1447 = vpop.f32.mrf.mxu0
        %v1448 = vadd.f32 0.0, %v1447
        %1449 = vmatprep.mubr.f32.mxu0 0.0
        %1450 = vmatmul.mubr.f32.gmra.mxu0 %v1279
        %v1451 = vpop.f32.mrf.mxu0
        %v1452 = vadd.f32 0.0, %v1451
        %v1453 = vpop.f32.mrf.mxu0
        %v1454 = vadd.f32 0.0, %v1453
        %1455 = vmatprep.mubr.f32.mxu0 0.0
        %1456 = vmatmul.mubr.f32.gmra.mxu0 %v1282
        %v1457 = vpop.f32.mrf.mxu0
        %v1458 = vadd.f32 0.0, %v1457
        %v1459 = vpop.f32.mrf.mxu0
        %v1460 = vadd.f32 0.0, %v1459
        %1461 = vdwg.mxu0
        %1462 = vmatprep.subr.mxu0 0.0
        %1463 = vmatpush1.msra.mxu0 0.0
        %1464 = vmatprep.subr.mxu0 0.0
        %1465 = vmatpush1.msra.mxu0 0.0
        %1466 = vmatprep.subr.mxu0 0.0
        %1467 = vmatpush1.msra.mxu0 0.0
        %1468 = vmatprep.subr.mxu0 0.0
        %1469 = vmatpush1.msra.mxu0 0.0
        %1470 = vmatprep.subr.mxu0 0.0
        %1471 = vmatpush1.msra.mxu0 0.0
        %1472 = vmatprep.subr.mxu0 0.0
        %1473 = vmatpush1.msra.mxu0 0.0
        %1474 = vmatprep.subr.mxu0 0.0
        %1475 = vmatpush1.msra.mxu0 0.0
        %1476 = vmatprep.subr.mxu0 0.0
        %1477 = vmatpush1.msra.mxu0 0.0
        %1478 = vmatprep.subr.mxu0 0.0
        %1479 = vmatpush1.msra.mxu0 0.0
        %1480 = vmatprep.subr.mxu0 0.0
        %1481 = vmatpush1.msra.mxu0 0.0
        %1482 = vmatprep.subr.mxu0 0.0
        %1483 = vmatpush1.msra.mxu0 0.0
        %1484 = vmatprep.subr.mxu0 0.0
        %1485 = vmatpush1.msra.mxu0 0.0
        %1486 = vmatprep.subr.mxu0 %v1265
        %1487 = vmatpush1.msra.mxu0 %v1264
        %1488 = vmatprep.subr.mxu0 %v1257
        %1489 = vmatpush1.msra.mxu0 %v1256
        %1490 = vmatprep.subr.mxu0 %v1249
        %1491 = vmatpush1.msra.mxu0 %v1248
        %1492 = vmatprep.subr.mxu0 %v1241
        %1493 = vmatpush1.msra.mxu0 %v1240
        %1494 = vmatprep.subr.mxu0 0.0
        %1495 = vmatpush2.msra.mxu0 0.0
        %1496 = vmatprep.subr.mxu0 0.0
        %1497 = vmatpush2.msra.mxu0 0.0
        %1498 = vmatprep.subr.mxu0 0.0
        %1499 = vmatpush2.msra.mxu0 0.0
        %1500 = vmatprep.subr.mxu0 0.0
        %1501 = vmatpush2.msra.mxu0 0.0
        %1502 = vmatprep.subr.mxu0 0.0
        %1503 = vmatpush2.msra.mxu0 0.0
        %1504 = vmatprep.subr.mxu0 0.0
        %1505 = vmatpush2.msra.mxu0 0.0
        %1506 = vmatprep.subr.mxu0 0.0
        %1507 = vmatpush2.msra.mxu0 0.0
        %1508 = vmatprep.subr.mxu0 0.0
        %1509 = vmatpush2.msra.mxu0 0.0
        %1510 = vmatprep.subr.mxu0 0.0
        %1511 = vmatpush2.msra.mxu0 0.0
        %1512 = vmatprep.subr.mxu0 0.0
        %1513 = vmatpush2.msra.mxu0 0.0
        %1514 = vmatprep.subr.mxu0 0.0
        %1515 = vmatpush2.msra.mxu0 0.0
        %1516 = vmatprep.subr.mxu0 0.0
        %1517 = vmatpush2.msra.mxu0 0.0
        %1518 = vmatprep.subr.mxu0 0.0
        %1519 = vmatpush2.msra.mxu0 0.0
        %1520 = vmatprep.subr.mxu0 0.0
        %1521 = vmatpush2.msra.mxu0 0.0
        %1522 = vmatprep.subr.mxu0 0.0
        %1523 = vmatpush2.msra.mxu0 0.0
        %1524 = vmatprep.subr.mxu0 0.0
        %1525 = vmatpush2.msra.mxu0 0.0
        %1526 = vmatprep.mubr.f32.mxu0 0.0
        %1527 = vmatmul.mubr.f32.gmra.mxu0 %v1273
        %v1528 = vpop.f32.mrf.mxu0
        %v1529 = vadd.f32 0.0, %v1528
        %v1530 = vpop.f32.mrf.mxu0
        %v1531 = vadd.f32 0.0, %v1530
        %1532 = vmatprep.mubr.f32.mxu0 0.0
        %1533 = vmatmul.mubr.f32.gmra.mxu0 %v1276
        %v1534 = vpop.f32.mrf.mxu0
        %v1535 = vadd.f32 0.0, %v1534
        %v1536 = vpop.f32.mrf.mxu0
        %v1537 = vadd.f32 0.0, %v1536
        %1538 = vmatprep.mubr.f32.mxu0 0.0
        %1539 = vmatmul.mubr.f32.gmra.mxu0 %v1279
        %v1540 = vpop.f32.mrf.mxu0
        %v1541 = vadd.f32 0.0, %v1540
        %v1542 = vpop.f32.mrf.mxu0
        %v1543 = vadd.f32 0.0, %v1542
        %1544 = vmatprep.mubr.f32.mxu0 0.0
        %1545 = vmatmul.mubr.f32.gmra.mxu0 %v1282
        %v1546 = vpop.f32.mrf.mxu0
        %v1547 = vadd.f32 0.0, %v1546
        %v1548 = vpop.f32.mrf.mxu0
        %v1549 = vadd.f32 0.0, %v1548
        %1550 = vdwg.mxu0
        %1551 = vmatprep.subr.mxu0 0.0
        %1552 = vmatpush1.msra.mxu0 0.0
        %1553 = vmatprep.subr.mxu0 0.0
        %1554 = vmatpush1.msra.mxu0 0.0
        %1555 = vmatprep.subr.mxu0 0.0
        %1556 = vmatpush1.msra.mxu0 0.0
        %1557 = vmatprep.subr.mxu0 0.0
        %1558 = vmatpush1.msra.mxu0 0.0
        %1559 = vmatprep.subr.mxu0 0.0
        %1560 = vmatpush1.msra.mxu0 0.0
        %1561 = vmatprep.subr.mxu0 0.0
        %1562 = vmatpush1.msra.mxu0 0.0
        %1563 = vmatprep.subr.mxu0 0.0
        %1564 = vmatpush1.msra.mxu0 0.0
        %1565 = vmatprep.subr.mxu0 0.0
        %1566 = vmatpush1.msra.mxu0 0.0
        %1567 = vmatprep.subr.mxu0 0.0
        %1568 = vmatpush1.msra.mxu0 0.0
        %1569 = vmatprep.subr.mxu0 0.0
        %1570 = vmatpush1.msra.mxu0 0.0
        %1571 = vmatprep.subr.mxu0 0.0
        %1572 = vmatpush1.msra.mxu0 0.0
        %1573 = vmatprep.subr.mxu0 0.0
        %1574 = vmatpush1.msra.mxu0 0.0
        %1575 = vmatprep.subr.mxu0 %v1267
        %1576 = vmatpush1.msra.mxu0 %v1266
        %1577 = vmatprep.subr.mxu0 %v1259
        %1578 = vmatpush1.msra.mxu0 %v1258
        %1579 = vmatprep.subr.mxu0 %v1251
        %1580 = vmatpush1.msra.mxu0 %v1250
        %1581 = vmatprep.subr.mxu0 %v1243
        %1582 = vmatpush1.msra.mxu0 %v1242
        %1583 = vmatprep.subr.mxu0 0.0
        %1584 = vmatpush2.msra.mxu0 0.0
        %1585 = vmatprep.subr.mxu0 0.0
        %1586 = vmatpush2.msra.mxu0 0.0
        %1587 = vmatprep.subr.mxu0 0.0
        %1588 = vmatpush2.msra.mxu0 0.0
        %1589 = vmatprep.subr.mxu0 0.0
        %1590 = vmatpush2.msra.mxu0 0.0
        %1591 = vmatprep.subr.mxu0 0.0
        %1592 = vmatpush2.msra.mxu0 0.0
        %1593 = vmatprep.subr.mxu0 0.0
        %1594 = vmatpush2.msra.mxu0 0.0
        %1595 = vmatprep.subr.mxu0 0.0
        %1596 = vmatpush2.msra.mxu0 0.0
        %1597 = vmatprep.subr.mxu0 0.0
        %1598 = vmatpush2.msra.mxu0 0.0
        %1599 = vmatprep.subr.mxu0 0.0
        %1600 = vmatpush2.msra.mxu0 0.0
        %1601 = vmatprep.subr.mxu0 0.0
        %1602 = vmatpush2.msra.mxu0 0.0
        %1603 = vmatprep.subr.mxu0 0.0
        %1604 = vmatpush2.msra.mxu0 0.0
        %1605 = vmatprep.subr.mxu0 0.0
        %1606 = vmatpush2.msra.mxu0 0.0
        %1607 = vmatprep.subr.mxu0 0.0
        %1608 = vmatpush2.msra.mxu0 0.0
        %1609 = vmatprep.subr.mxu0 0.0
        %1610 = vmatpush2.msra.mxu0 0.0
        %1611 = vmatprep.subr.mxu0 0.0
        %1612 = vmatpush2.msra.mxu0 0.0
        %1613 = vmatprep.subr.mxu0 0.0
        %1614 = vmatpush2.msra.mxu0 0.0
        %1615 = vmatprep.mubr.f32.mxu0 0.0
        %1616 = vmatmul.mubr.f32.gmra.mxu0 %v1273
        %v1617 = vpop.f32.mrf.mxu0
        %v1618 = vadd.f32 0.0, %v1617
        %v1619 = vpop.f32.mrf.mxu0
        %v1620 = vadd.f32 0.0, %v1619
        %1621 = vmatprep.mubr.f32.mxu0 0.0
        %1622 = vmatmul.mubr.f32.gmra.mxu0 %v1276
        %v1623 = vpop.f32.mrf.mxu0
        %v1624 = vadd.f32 0.0, %v1623
        %v1625 = vpop.f32.mrf.mxu0
        %v1626 = vadd.f32 0.0, %v1625
        %1627 = vmatprep.mubr.f32.mxu0 0.0
        %1628 = vmatmul.mubr.f32.gmra.mxu0 %v1279
        %v1629 = vpop.f32.mrf.mxu0
        %v1630 = vadd.f32 0.0, %v1629
        %v1631 = vpop.f32.mrf.mxu0
        %v1632 = vadd.f32 0.0, %v1631
        %1633 = vmatprep.mubr.f32.mxu0 0.0
        %1634 = vmatmul.mubr.f32.gmra.mxu0 %v1282
        %v1635 = vpop.f32.mrf.mxu0
        %v1636 = vadd.f32 0.0, %v1635
        %v1637 = vpop.f32.mrf.mxu0
        %v1638 = vadd.f32 0.0, %v1637
        %1639 = vdwg.mxu0
        %v1640 = vadd.f32 %v1236, %v1351
        %v1641 = vadd.f32 %v1237, %v1353
        %v1642 = vadd.f32 %v1238, %v1440
        %v1643 = vadd.f32 %v1239, %v1442
        %v1644 = vadd.f32 %v1240, %v1529
        %v1645 = vadd.f32 %v1241, %v1531
        %v1646 = vadd.f32 %v1242, %v1618
        %v1647 = vadd.f32 %v1243, %v1620
        %v1648 = vadd.f32 %v1244, %v1357
        %v1649 = vadd.f32 %v1245, %v1359
        %v1650 = vadd.f32 %v1246, %v1446
        %v1651 = vadd.f32 %v1247, %v1448
        %v1652 = vadd.f32 %v1248, %v1535
        %v1653 = vadd.f32 %v1249, %v1537
        %v1654 = vadd.f32 %v1250, %v1624
        %v1655 = vadd.f32 %v1251, %v1626
        %v1656 = vadd.f32 %v1252, %v1363
        %v1657 = vadd.f32 %v1253, %v1365
        %v1658 = vadd.f32 %v1254, %v1452
        %v1659 = vadd.f32 %v1255, %v1454
        %v1660 = vadd.f32 %v1256, %v1541
        %v1661 = vadd.f32 %v1257, %v1543
        %v1662 = vadd.f32 %v1258, %v1630
        %v1663 = vadd.f32 %v1259, %v1632
        %v1664 = vadd.f32 %v1260, %v1369
        %v1665 = vadd.f32 %v1261, %v1371
        %v1666 = vadd.f32 %v1262, %v1458
        %v1667 = vadd.f32 %v1263, %v1460
        %v1668 = vadd.f32 %v1264, %v1547
        %v1669 = vadd.f32 %v1265, %v1549
        %v1670 = vadd.f32 %v1266, %v1636
        %v1671 = vadd.f32 %v1267, %v1638
        %v1672 = vld [vmem:[%s5] sm:$0xff]
        %v1673 = vld [vmem:[%s5 + $0x8] sm:$0xff]
        %v1674 = vld [vmem:[%s5 + $0x10] sm:$0xff]
        %v1675 = vld [vmem:[%s5 + $0x18] sm:$0xff]
        %1677 = vset.pattern.permute.xlu0 0
        %1678 = vperm.xlu0 %1677, %v1672
        %v1679 = vpop.permute.xlu0 %1678
        %1682 = vset.pattern.permute.xlu0 0
        %1683 = vperm.xlu0 %1682, %v1673
        %v1684 = vpop.permute.xlu0 %1683
        %1687 = vset.pattern.permute.xlu0 0
        %1688 = vperm.xlu0 %1687, %v1674
        %v1689 = vpop.permute.xlu0 %1688
        %1692 = vset.pattern.permute.xlu0 0
        %1693 = vperm.xlu0 %1692, %v1675
        %v1694 = vpop.permute.xlu0 %1693
        %v1696 = vadd.f32 %v1640, %v1679
        %v1697 = vadd.f32 %v1641, %v1679
        %v1698 = vadd.f32 %v1642, %v1679
        %v1699 = vadd.f32 %v1643, %v1679
        %v1700 = vadd.f32 %v1644, %v1679
        %v1701 = vadd.f32 %v1645, %v1679
        %v1702 = vadd.f32 %v1646, %v1679
        %v1703 = vadd.f32 %v1647, %v1679
        %v1704 = vadd.f32 %v1648, %v1684
        %v1705 = vadd.f32 %v1649, %v1684
        %v1706 = vadd.f32 %v1650, %v1684
        %v1707 = vadd.f32 %v1651, %v1684
        %v1708 = vadd.f32 %v1652, %v1684
        %v1709 = vadd.f32 %v1653, %v1684
        %v1710 = vadd.f32 %v1654, %v1684
        %v1711 = vadd.f32 %v1655, %v1684
        %v1712 = vadd.f32 %v1656, %v1689
        %v1713 = vadd.f32 %v1657, %v1689
        %v1714 = vadd.f32 %v1658, %v1689
        %v1715 = vadd.f32 %v1659, %v1689
        %v1716 = vadd.f32 %v1660, %v1689
        %v1717 = vadd.f32 %v1661, %v1689
        %v1718 = vadd.f32 %v1662, %v1689
        %v1719 = vadd.f32 %v1663, %v1689
        %v1720 = vadd.f32 %v1664, %v1694
        %v1721 = vadd.f32 %v1665, %v1694
        %v1722 = vadd.f32 %v1666, %v1694
        %v1723 = vadd.f32 %v1667, %v1694
        %v1724 = vadd.f32 %v1668, %v1694
        %v1725 = vadd.f32 %v1669, %v1694
        %v1726 = vadd.f32 %v1670, %v1694
        %v1727 = vadd.f32 %v1671, %v1694
        %v1728 = vmax.f32 %v1696, 0.0
        %v1729 = vmax.f32 %v1697, 0.0
        %v1730 = vmax.f32 %v1698, 0.0
        %v1731 = vmax.f32 %v1699, 0.0
        %v1732 = vmax.f32 %v1700, 0.0
        %v1733 = vmax.f32 %v1701, 0.0
        %v1734 = vmax.f32 %v1702, 0.0
        %v1735 = vmax.f32 %v1703, 0.0
        %v1736 = vmax.f32 %v1704, 0.0
        %v1737 = vmax.f32 %v1705, 0.0
        %v1738 = vmax.f32 %v1706, 0.0
        %v1739 = vmax.f32 %v1707, 0.0
        %v1740 = vmax.f32 %v1708, 0.0
        %v1741 = vmax.f32 %v1709, 0.0
        %v1742 = vmax.f32 %v1710, 0.0
        %v1743 = vmax.f32 %v1711, 0.0
        %v1744 = vmax.f32 %v1712, 0.0
        %v1745 = vmax.f32 %v1713, 0.0
        %v1746 = vmax.f32 %v1714, 0.0
        %v1747 = vmax.f32 %v1715, 0.0
        %v1748 = vmax.f32 %v1716, 0.0
        %v1749 = vmax.f32 %v1717, 0.0
        %v1750 = vmax.f32 %v1718, 0.0
        %v1751 = vmax.f32 %v1719, 0.0
        %v1752 = vmax.f32 %v1720, 0.0
        %v1753 = vmax.f32 %v1721, 0.0
        %v1754 = vmax.f32 %v1722, 0.0
        %v1755 = vmax.f32 %v1723, 0.0
        %v1756 = vmax.f32 %v1724, 0.0
        %v1757 = vmax.f32 %v1725, 0.0
        %v1758 = vmax.f32 %v1726, 0.0
        %v1759 = vmax.f32 %v1727, 0.0
        %v1760 = vld [vmem:[%s6] sm:$0x3]
        %v1761 = vld [vmem:[%s7] sm:$0x3]
        %1763 = vset.pattern.permute.xlu0 0
        %1764 = vperm.xlu0 %1763, %v1761
        %v1765 = vpop.permute.xlu0 %1764
        %v1768 = vsel %vm779, %v1760, 0
        %1770 = vmatprep.subr.mxu0 0.0
        %1771 = vmatpush1.msra.mxu0 0.0
        %1772 = vmatprep.subr.mxu0 0.0
        %1773 = vmatpush1.msra.mxu0 0.0
        %1774 = vmatprep.subr.mxu0 0.0
        %1775 = vmatpush1.msra.mxu0 0.0
        %1776 = vmatprep.subr.mxu0 0.0
        %1777 = vmatpush1.msra.mxu0 0.0
        %1778 = vmatprep.subr.mxu0 0.0
        %1779 = vmatpush1.msra.mxu0 0.0
        %1780 = vmatprep.subr.mxu0 0.0
        %1781 = vmatpush1.msra.mxu0 0.0
        %1782 = vmatprep.subr.mxu0 0.0
        %1783 = vmatpush1.msra.mxu0 0.0
        %1784 = vmatprep.subr.mxu0 0.0
        %1785 = vmatpush1.msra.mxu0 0.0
        %1786 = vmatprep.subr.mxu0 0.0
        %1787 = vmatpush1.msra.mxu0 0.0
        %1788 = vmatprep.subr.mxu0 0.0
        %1789 = vmatpush1.msra.mxu0 0.0
        %1790 = vmatprep.subr.mxu0 0.0
        %1791 = vmatpush1.msra.mxu0 0.0
        %1792 = vmatprep.subr.mxu0 0.0
        %1793 = vmatpush1.msra.mxu0 0.0
        %1794 = vmatprep.subr.mxu0 %v1753
        %1795 = vmatpush1.msra.mxu0 %v1752
        %1796 = vmatprep.subr.mxu0 %v1745
        %1797 = vmatpush1.msra.mxu0 %v1744
        %1798 = vmatprep.subr.mxu0 %v1737
        %1799 = vmatpush1.msra.mxu0 %v1736
        %1800 = vmatprep.subr.mxu0 %v1729
        %1801 = vmatpush1.msra.mxu0 %v1728
        %1802 = vmatprep.subr.mxu0 0.0
        %1803 = vmatpush2.msra.mxu0 0.0
        %1804 = vmatprep.subr.mxu0 0.0
        %1805 = vmatpush2.msra.mxu0 0.0
        %1806 = vmatprep.subr.mxu0 0.0
        %1807 = vmatpush2.msra.mxu0 0.0
        %1808 = vmatprep.subr.mxu0 0.0
        %1809 = vmatpush2.msra.mxu0 0.0
        %1810 = vmatprep.subr.mxu0 0.0
        %1811 = vmatpush2.msra.mxu0 0.0
        %1812 = vmatprep.subr.mxu0 0.0
        %1813 = vmatpush2.msra.mxu0 0.0
        %1814 = vmatprep.subr.mxu0 0.0
        %1815 = vmatpush2.msra.mxu0 0.0
        %1816 = vmatprep.subr.mxu0 0.0
        %1817 = vmatpush2.msra.mxu0 0.0
        %1818 = vmatprep.subr.mxu0 0.0
        %1819 = vmatpush2.msra.mxu0 0.0
        %1820 = vmatprep.subr.mxu0 0.0
        %1821 = vmatpush2.msra.mxu0 0.0
        %1822 = vmatprep.subr.mxu0 0.0
        %1823 = vmatpush2.msra.mxu0 0.0
        %1824 = vmatprep.subr.mxu0 0.0
        %1825 = vmatpush2.msra.mxu0 0.0
        %1826 = vmatprep.subr.mxu0 0.0
        %1827 = vmatpush2.msra.mxu0 0.0
        %1828 = vmatprep.subr.mxu0 0.0
        %1829 = vmatpush2.msra.mxu0 0.0
        %1830 = vmatprep.subr.mxu0 0.0
        %1831 = vmatpush2.msra.mxu0 0.0
        %1832 = vmatprep.subr.mxu0 0.0
        %1833 = vmatpush2.msra.mxu0 0.0
        %1834 = vmatprep.mubr.f32.mxu0 0.0
        %1835 = vmatmul.mubr.f32.gmra.mxu0 %v1768
        %v1836 = vpop.f32.mrf.mxu0
        %v1837 = vadd.f32 %v1765, %v1836
        %v1838 = vpop.f32.mrf.mxu0
        %v1839 = vadd.f32 %v1765, %v1838
        %1840 = vdwg.mxu0
        %1841 = vmatprep.subr.mxu0 0.0
        %1842 = vmatpush1.msra.mxu0 0.0
        %1843 = vmatprep.subr.mxu0 0.0
        %1844 = vmatpush1.msra.mxu0 0.0
        %1845 = vmatprep.subr.mxu0 0.0
        %1846 = vmatpush1.msra.mxu0 0.0
        %1847 = vmatprep.subr.mxu0 0.0
        %1848 = vmatpush1.msra.mxu0 0.0
        %1849 = vmatprep.subr.mxu0 0.0
        %1850 = vmatpush1.msra.mxu0 0.0
        %1851 = vmatprep.subr.mxu0 0.0
        %1852 = vmatpush1.msra.mxu0 0.0
        %1853 = vmatprep.subr.mxu0 0.0
        %1854 = vmatpush1.msra.mxu0 0.0
        %1855 = vmatprep.subr.mxu0 0.0
        %1856 = vmatpush1.msra.mxu0 0.0
        %1857 = vmatprep.subr.mxu0 0.0
        %1858 = vmatpush1.msra.mxu0 0.0
        %1859 = vmatprep.subr.mxu0 0.0
        %1860 = vmatpush1.msra.mxu0 0.0
        %1861 = vmatprep.subr.mxu0 0.0
        %1862 = vmatpush1.msra.mxu0 0.0
        %1863 = vmatprep.subr.mxu0 0.0
        %1864 = vmatpush1.msra.mxu0 0.0
        %1865 = vmatprep.subr.mxu0 %v1755
        %1866 = vmatpush1.msra.mxu0 %v1754
        %1867 = vmatprep.subr.mxu0 %v1747
        %1868 = vmatpush1.msra.mxu0 %v1746
        %1869 = vmatprep.subr.mxu0 %v1739
        %1870 = vmatpush1.msra.mxu0 %v1738
        %1871 = vmatprep.subr.mxu0 %v1731
        %1872 = vmatpush1.msra.mxu0 %v1730
        %1873 = vmatprep.subr.mxu0 0.0
        %1874 = vmatpush2.msra.mxu0 0.0
        %1875 = vmatprep.subr.mxu0 0.0
        %1876 = vmatpush2.msra.mxu0 0.0
        %1877 = vmatprep.subr.mxu0 0.0
        %1878 = vmatpush2.msra.mxu0 0.0
        %1879 = vmatprep.subr.mxu0 0.0
        %1880 = vmatpush2.msra.mxu0 0.0
        %1881 = vmatprep.subr.mxu0 0.0
        %1882 = vmatpush2.msra.mxu0 0.0
        %1883 = vmatprep.subr.mxu0 0.0
        %1884 = vmatpush2.msra.mxu0 0.0
        %1885 = vmatprep.subr.mxu0 0.0
        %1886 = vmatpush2.msra.mxu0 0.0
        %1887 = vmatprep.subr.mxu0 0.0
        %1888 = vmatpush2.msra.mxu0 0.0
        %1889 = vmatprep.subr.mxu0 0.0
        %1890 = vmatpush2.msra.mxu0 0.0
        %1891 = vmatprep.subr.mxu0 0.0
        %1892 = vmatpush2.msra.mxu0 0.0
        %1893 = vmatprep.subr.mxu0 0.0
        %1894 = vmatpush2.msra.mxu0 0.0
        %1895 = vmatprep.subr.mxu0 0.0
        %1896 = vmatpush2.msra.mxu0 0.0
        %1897 = vmatprep.subr.mxu0 0.0
        %1898 = vmatpush2.msra.mxu0 0.0
        %1899 = vmatprep.subr.mxu0 0.0
        %1900 = vmatpush2.msra.mxu0 0.0
        %1901 = vmatprep.subr.mxu0 0.0
        %1902 = vmatpush2.msra.mxu0 0.0
        %1903 = vmatprep.subr.mxu0 0.0
        %1904 = vmatpush2.msra.mxu0 0.0
        %1905 = vmatprep.mubr.f32.mxu0 0.0
        %1906 = vmatmul.mubr.f32.gmra.mxu0 %v1768
        %v1907 = vpop.f32.mrf.mxu0
        %v1908 = vadd.f32 %v1765, %v1907
        %v1909 = vpop.f32.mrf.mxu0
        %v1910 = vadd.f32 %v1765, %v1909
        %1911 = vdwg.mxu0
        %1912 = vmatprep.subr.mxu0 0.0
        %1913 = vmatpush1.msra.mxu0 0.0
        %1914 = vmatprep.subr.mxu0 0.0
        %1915 = vmatpush1.msra.mxu0 0.0
        %1916 = vmatprep.subr.mxu0 0.0
        %1917 = vmatpush1.msra.mxu0 0.0
        %1918 = vmatprep.subr.mxu0 0.0
        %1919 = vmatpush1.msra.mxu0 0.0
        %1920 = vmatprep.subr.mxu0 0.0
        %1921 = vmatpush1.msra.mxu0 0.0
        %1922 = vmatprep.subr.mxu0 0.0
        %1923 = vmatpush1.msra.mxu0 0.0
        %1924 = vmatprep.subr.mxu0 0.0
        %1925 = vmatpush1.msra.mxu0 0.0
        %1926 = vmatprep.subr.mxu0 0.0
        %1927 = vmatpush1.msra.mxu0 0.0
        %1928 = vmatprep.subr.mxu0 0.0
        %1929 = vmatpush1.msra.mxu0 0.0
        %1930 = vmatprep.subr.mxu0 0.0
        %1931 = vmatpush1.msra.mxu0 0.0
        %1932 = vmatprep.subr.mxu0 0.0
        %1933 = vmatpush1.msra.mxu0 0.0
        %1934 = vmatprep.subr.mxu0 0.0
        %1935 = vmatpush1.msra.mxu0 0.0
        %1936 = vmatprep.subr.mxu0 %v1757
        %1937 = vmatpush1.msra.mxu0 %v1756
        %1938 = vmatprep.subr.mxu0 %v1749
        %1939 = vmatpush1.msra.mxu0 %v1748
        %1940 = vmatprep.subr.mxu0 %v1741
        %1941 = vmatpush1.msra.mxu0 %v1740
        %1942 = vmatprep.subr.mxu0 %v1733
        %1943 = vmatpush1.msra.mxu0 %v1732
        %1944 = vmatprep.subr.mxu0 0.0
        %1945 = vmatpush2.msra.mxu0 0.0
        %1946 = vmatprep.subr.mxu0 0.0
        %1947 = vmatpush2.msra.mxu0 0.0
        %1948 = vmatprep.subr.mxu0 0.0
        %1949 = vmatpush2.msra.mxu0 0.0
        %1950 = vmatprep.subr.mxu0 0.0
        %1951 = vmatpush2.msra.mxu0 0.0
        %1952 = vmatprep.subr.mxu0 0.0
        %1953 = vmatpush2.msra.mxu0 0.0
        %1954 = vmatprep.subr.mxu0 0.0
        %1955 = vmatpush2.msra.mxu0 0.0
        %1956 = vmatprep.subr.mxu0 0.0
        %1957 = vmatpush2.msra.mxu0 0.0
        %1958 = vmatprep.subr.mxu0 0.0
        %1959 = vmatpush2.msra.mxu0 0.0
        %1960 = vmatprep.subr.mxu0 0.0
        %1961 = vmatpush2.msra.mxu0 0.0
        %1962 = vmatprep.subr.mxu0 0.0
        %1963 = vmatpush2.msra.mxu0 0.0
        %1964 = vmatprep.subr.mxu0 0.0
        %1965 = vmatpush2.msra.mxu0 0.0
        %1966 = vmatprep.subr.mxu0 0.0
        %1967 = vmatpush2.msra.mxu0 0.0
        %1968 = vmatprep.subr.mxu0 0.0
        %1969 = vmatpush2.msra.mxu0 0.0
        %1970 = vmatprep.subr.mxu0 0.0
        %1971 = vmatpush2.msra.mxu0 0.0
        %1972 = vmatprep.subr.mxu0 0.0
        %1973 = vmatpush2.msra.mxu0 0.0
        %1974 = vmatprep.subr.mxu0 0.0
        %1975 = vmatpush2.msra.mxu0 0.0
        %1976 = vmatprep.mubr.f32.mxu0 0.0
        %1977 = vmatmul.mubr.f32.gmra.mxu0 %v1768
        %v1978 = vpop.f32.mrf.mxu0
        %v1979 = vadd.f32 %v1765, %v1978
        %v1980 = vpop.f32.mrf.mxu0
        %v1981 = vadd.f32 %v1765, %v1980
        %1982 = vdwg.mxu0
        %1983 = vmatprep.subr.mxu0 0.0
        %1984 = vmatpush1.msra.mxu0 0.0
        %1985 = vmatprep.subr.mxu0 0.0
        %1986 = vmatpush1.msra.mxu0 0.0
        %1987 = vmatprep.subr.mxu0 0.0
        %1988 = vmatpush1.msra.mxu0 0.0
        %1989 = vmatprep.subr.mxu0 0.0
        %1990 = vmatpush1.msra.mxu0 0.0
        %1991 = vmatprep.subr.mxu0 0.0
        %1992 = vmatpush1.msra.mxu0 0.0
        %1993 = vmatprep.subr.mxu0 0.0
        %1994 = vmatpush1.msra.mxu0 0.0
        %1995 = vmatprep.subr.mxu0 0.0
        %1996 = vmatpush1.msra.mxu0 0.0
        %1997 = vmatprep.subr.mxu0 0.0
        %1998 = vmatpush1.msra.mxu0 0.0
        %1999 = vmatprep.subr.mxu0 0.0
        %2000 = vmatpush1.msra.mxu0 0.0
        %2001 = vmatprep.subr.mxu0 0.0
        %2002 = vmatpush1.msra.mxu0 0.0
        %2003 = vmatprep.subr.mxu0 0.0
        %2004 = vmatpush1.msra.mxu0 0.0
        %2005 = vmatprep.subr.mxu0 0.0
        %2006 = vmatpush1.msra.mxu0 0.0
        %2007 = vmatprep.subr.mxu0 %v1759
        %2008 = vmatpush1.msra.mxu0 %v1758
        %2009 = vmatprep.subr.mxu0 %v1751
        %2010 = vmatpush1.msra.mxu0 %v1750
        %2011 = vmatprep.subr.mxu0 %v1743
        %2012 = vmatpush1.msra.mxu0 %v1742
        %2013 = vmatprep.subr.mxu0 %v1735
        %2014 = vmatpush1.msra.mxu0 %v1734
        %2015 = vmatprep.subr.mxu0 0.0
        %2016 = vmatpush2.msra.mxu0 0.0
        %2017 = vmatprep.subr.mxu0 0.0
        %2018 = vmatpush2.msra.mxu0 0.0
        %2019 = vmatprep.subr.mxu0 0.0
        %2020 = vmatpush2.msra.mxu0 0.0
        %2021 = vmatprep.subr.mxu0 0.0
        %2022 = vmatpush2.msra.mxu0 0.0
        %2023 = vmatprep.subr.mxu0 0.0
        %2024 = vmatpush2.msra.mxu0 0.0
        %2025 = vmatprep.subr.mxu0 0.0
        %2026 = vmatpush2.msra.mxu0 0.0
        %2027 = vmatprep.subr.mxu0 0.0
        %2028 = vmatpush2.msra.mxu0 0.0
        %2029 = vmatprep.subr.mxu0 0.0
        %2030 = vmatpush2.msra.mxu0 0.0
        %2031 = vmatprep.subr.mxu0 0.0
        %2032 = vmatpush2.msra.mxu0 0.0
        %2033 = vmatprep.subr.mxu0 0.0
        %2034 = vmatpush2.msra.mxu0 0.0
        %2035 = vmatprep.subr.mxu0 0.0
        %2036 = vmatpush2.msra.mxu0 0.0
        %2037 = vmatprep.subr.mxu0 0.0
        %2038 = vmatpush2.msra.mxu0 0.0
        %2039 = vmatprep.subr.mxu0 0.0
        %2040 = vmatpush2.msra.mxu0 0.0
        %2041 = vmatprep.subr.mxu0 0.0
        %2042 = vmatpush2.msra.mxu0 0.0
        %2043 = vmatprep.subr.mxu0 0.0
        %2044 = vmatpush2.msra.mxu0 0.0
        %2045 = vmatprep.subr.mxu0 0.0
        %2046 = vmatpush2.msra.mxu0 0.0
        %2047 = vmatprep.mubr.f32.mxu0 0.0
        %2048 = vmatmul.mubr.f32.gmra.mxu0 %v1768
        %v2049 = vpop.f32.mrf.mxu0
        %v2050 = vadd.f32 %v1765, %v2049
        %v2051 = vpop.f32.mrf.mxu0
        %v2052 = vadd.f32 %v1765, %v2051
        %2053 = vdwg.mxu0
        %v2054 = vtanh.pop %v1837
        %v2055 = vtanh.pop %v1839
        %v2056 = vtanh.pop %v1908
        %v2057 = vtanh.pop %v1910
        %v2058 = vtanh.pop %v1979
        %v2059 = vtanh.pop %v1981
        %v2060 = vtanh.pop %v2050
        %v2061 = vtanh.pop %v2052
        %v2070 = vcombine.low %v2054, %v2055
        %v2071 = vcombine.low %v2056, %v2057
        %v2073 = vunpack.c.l.s4 1983009808
        %v2074 = vunpack.c.0.s8 %v2073
        %v2075 = vlaneseq
        %v2076 = vshrl.u32 %v2075, 7
        %v2077 = vsub.s32 %v2074, %v2076
        %v2078 = vrot.slane %v2070, %v2077
        %v2080 = vunpack.c.l.s4 1983009808
        %v2081 = vunpack.c.0.s8 %v2080
        %v2082 = vlaneseq
        %v2083 = vshrl.u32 %v2082, 7
        %v2084 = vsub.s32 %v2081, %v2083
        %v2085 = vrot.slane %v2071, %v2084
        %v2086 = vcombine.low %v2078, %v2085
        %v2087 = vcombine.low %v2058, %v2059
        %v2088 = vcombine.low %v2060, %v2061
        %v2090 = vunpack.c.l.s4 1983009808
        %v2091 = vunpack.c.0.s8 %v2090
        %v2092 = vlaneseq
        %v2093 = vshrl.u32 %v2092, 7
        %v2094 = vsub.s32 %v2091, %v2093
        %v2095 = vrot.slane %v2087, %v2094
        %v2097 = vunpack.c.l.s4 1983009808
        %v2098 = vunpack.c.0.s8 %v2097
        %v2099 = vlaneseq
        %v2100 = vshrl.u32 %v2099, 7
        %v2101 = vsub.s32 %v2098, %v2100
        %v2102 = vrot.slane %v2088, %v2101
        %v2103 = vcombine.low %v2095, %v2102
        %2106 = vst [vmem:[%s328] sm:$0xff] %v2086
        %2107 = vst [vmem:[%s328 + $0x8] sm:$0xff] %v2103
        %s2108 = sand.u32 %s222, 1
        %s2109 = scalar_lea.sflag [#allocation3], %s2108
        %s2110 = sand.u32 %s222, 1
        %s2111 = smul.addr %s2110, 16
        %s2112 = scalar_lea.vmem [#allocation2], %s2111
        // Predicated region
        $region53: #{tpu_custom_call.1} parent=51 // pred_check
          %p2113 = pneg %p232
        $region54: #{tpu_custom_call.1} parent=51 // pred_check_branch
          %2115 = sbr.rel (%p2113) target = $region56
        $region55: #{tpu_custom_call.1} parent=51 // pred_region
          %s2116 = smul.u32 8, %s27
          %s2118 = ssub.s32 256, 256
          %2119 = vsyncadd %s2109, %s2118
          %s2120 = smul.addr %s26, 16
          %s2121 = sadd.s32 %s2116, %s2120
          %s2122 = smul.addr %s2121, 32
          %s2123 = scalar_lea.hbm %s8, %s2122
          %s2125 = sshll.u32 %s2112, 4
          %s2126 = int_to_ptr.vmem [resolvable:$true] %s2125
          %2128 = dma.vmem_to_hbm [thread:$0]  %s2126, 256, %s2123, %s2109
        $region56: #{tpu_custom_call.1} parent=51 // pred_fallthru
          _
      $region52: #{tpu_custom_call.1} parent=5 // pred_fallthru
        _
      %p2129 = scmp.le.s32.totalorder 2, %s17
      // Predicated region
      $region57: #{tpu_custom_call.1} parent=5 // pred_check
        %p2130 = pneg %p2129
      $region58: #{tpu_custom_call.1} parent=5 // pred_check_branch
        %2132 = sbr.rel (%p2130) target = $region60
      $region59: #{tpu_custom_call.1} parent=5 // pred_region
        %s2133 = ssub.s32 %s17, 2
        // Predicated region
        $region61: #{tpu_custom_call.1} parent=59 // pred_check
          %p2134 = pneg %p238
        $region62: #{tpu_custom_call.1} parent=59 // pred_check_branch
          %2136 = sbr.rel (%p2134) target = $region64
        $region63: #{tpu_custom_call.1} parent=59 // pred_region
          %s2137 = sand.u32 %s223, 1
          %s2138 = scalar_lea.sflag [#allocation3], %s2137
          %s2139 = sand.u32 %s223, 1
          %s2140 = smul.addr %s2139, 16
          %s2141 = scalar_lea.vmem [#allocation2], %s2140
          %2142 = dma.done %s2138, 256
        $region64: #{tpu_custom_call.1} parent=59 // pred_fallthru
          _
      $region60: #{tpu_custom_call.1} parent=5 // pred_fallthru
        _
    $region6: #{tpu_custom_call.1} parent=1 // loop_footer
      %s21 = sadd.s32 1, %s17
    $region7: #{tpu_custom_call.1} parent=1 // loop_footer_branch
      %16 = sbr.rel target = $region3
    $region8: #{tpu_custom_call.1} parent=1 // loop_exit
      _
    %2143 = vsyncpa [#allocation3], 1
    %s2144 = scalar_lea.sflag [#allocation3], 1
    %2145 = vsyncpa %s2144, 1

</llo_original>
